<compile_context>
chip_gen: v7x
topology: tpu7x:2x2x1
jax: 0.10.0
libtpu: 0.0.40
codegen_flags: <defaults>
</compile_context>

<pallas_src>
import math
from functools import partial

import jax
import jax.numpy as jnp
from jax.experimental import pallas as pl
from jax.experimental.pallas import tpu as pltpu

# ---- config (stands in for __C) --------------------------------------------
HIDDEN = 32            # __C.HIDDEN_SIZE
HEADS = 4              # __C.MULTI_HEAD
DH = HIDDEN // HEADS   # __C.HIDDEN_SIZE_HEAD
B, L = 2, 8            # small demo shapes


# ---- shared attention core (post-projection) --------------------------------
def _attention_core(q, k, v, qp, kp, m_ref, wm_ref, bm_ref, out_ref, pos_ref,
                    *, bb, seq, dim, heads, dh):
    f32, bf16 = jnp.float32, jnp.bfloat16
    rows = bb * seq

    # (rows, D) -> (bb, seq, D): leading-dim split, free while seq % 8 == 0.
    q3, k3, v3, qp3, kp3 = (t.reshape(bb, seq, dim) for t in (q, k, v, qp, kp))

    # boolean key mask, computed once per grid step; broadcasts over query rows.
    mask_b = m_ref[...] > 0.0                      # (bb, 1, seq)

    out = jnp.zeros((rows, dim), f32)
    for h in range(heads):                         # static unroll; dots batched over bb
        sl = slice(h * dh, (h + 1) * dh)
        s = jnp.einsum("bqd,bkd->bqk",
                       q3[..., sl].astype(bf16), k3[..., sl].astype(bf16),
                       preferred_element_type=f32)          # scale folded into wq
        ps = jnp.einsum("bqd,bkd->bqk",
                        qp3[..., sl].astype(bf16), kp3[..., sl].astype(bf16),
                        preferred_element_type=f32)         # scale folded into wqp
        pos_ref[h] = ps                            # module returns pre-mask pos_scores

        sc = jnp.where(mask_b, -1e9, s + ps)       # exact masked_fill semantics
        sc = sc - jnp.max(sc, axis=-1, keepdims=True)
        e = jnp.exp(sc)
        # approx reciprocal rides the EUP slot (~1e-3 rel. error; fine for eval)
        p = e * pl.reciprocal(jnp.sum(e, axis=-1, keepdims=True), approx=True)

        o = jnp.einsum("bqk,bkd->bqd", p.astype(bf16), v3[..., sl].astype(bf16),
                       preferred_element_type=f32)           # (bb, seq, dh)
        # distributed linear_merge: atted @ Wm == sum_h O_h @ Wm[h*dh:(h+1)*dh]
        out = out + jnp.dot(o.reshape(rows, dh).astype(bf16),
                            wm_ref[h * dh:(h + 1) * dh, :],
                            preferred_element_type=f32)
    out_ref[...] = out + bm_ref[...]


# ---- kernels ----------------------------------------------------------------
def _mhatt_self_kernel(x_ref, xp_ref, m_ref, wqkv_ref, bqkv_ref, wpos_ref, bpos_ref,
                       wm_ref, bm_ref, out_ref, pos_ref, *, bb, seq, dim, heads, dh):
    """Self-attention fast path: q is k is v, q_pos is k_pos (2 activation slabs)."""
    f32, bf16 = jnp.float32, jnp.bfloat16
    d = dim
    x_bf = x_ref[...].astype(bf16)
    xp_bf = xp_ref[...].astype(bf16)
    # fused wide-N projections: one matmul for q|k|v, one for q_pos|k_pos
    qkv = jnp.dot(x_bf, wqkv_ref[...], preferred_element_type=f32) + bqkv_ref[...]
    pp = jnp.dot(xp_bf, wpos_ref[...], preferred_element_type=f32) + bpos_ref[...]
    _attention_core(qkv[:, 0:d], qkv[:, d:2 * d], qkv[:, 2 * d:3 * d],
                    pp[:, 0:d], pp[:, d:2 * d],
                    m_ref, wm_ref, bm_ref, out_ref, pos_ref,
                    bb=bb, seq=seq, dim=dim, heads=heads, dh=dh)


def _mhatt_cross_kernel(q_ref, k_ref, v_ref, qp_ref, kp_ref, m_ref,
                        wqkv_ref, bqkv_ref, wpos_ref, bpos_ref, wm_ref, bm_ref,
                        out_ref, pos_ref, *, bb, seq, dim, heads, dh):
    """General path: distinct v/k/q (and q_pos/k_pos) tensors."""
    f32, bf16 = jnp.float32, jnp.bfloat16
    d = dim

    def proj(x_ref_, w_ref_, b_ref_, i):
        return (jnp.dot(x_ref_[...].astype(bf16), w_ref_[:, i * d:(i + 1) * d],
                        preferred_element_type=f32)
                + b_ref_[:, i * d:(i + 1) * d])

    q = proj(q_ref, wqkv_ref, bqkv_ref, 0)
    k = proj(k_ref, wqkv_ref, bqkv_ref, 1)
    v = proj(v_ref, wqkv_ref, bqkv_ref, 2)
    qp = proj(qp_ref, wpos_ref, bpos_ref, 0)
    kp = proj(kp_ref, wpos_ref, bpos_ref, 1)
    _attention_core(q, k, v, qp, kp, m_ref, wm_ref, bm_ref, out_ref, pos_ref,
                    bb=bb, seq=seq, dim=dim, heads=heads, dh=dh)


# ---- wrapper ----------------------------------------------------------------
def _default_block_b(Bv, Lv):
    # target ~512 rows/step (v5e/v6e HBM-roofline sweet spot), but keep >=2 grid
    # steps whenever B >= 2 so both v7x TensorCores get work.
    target_rows = 512
    bb = max(1, min(Bv, target_rows // max(Lv, 1)))
    if Bv >= 2:
        bb = min(bb, Bv // 2)
    while Bv % bb:
        bb -= 1
    return bb


def mhatt_forward(v, k, q, mask, q_pos, k_pos, params, *, block_b=None):
    Bv, Lv, Dv = q.shape
    heads = HEADS
    dh = Dv // heads
    assert Dv % heads == 0
    # keep in-kernel (rows, D) <-> (bb, seq, D) reshapes tile-aligned / free
    assert Lv % 8 == 0, "seq length must be a multiple of 8 (sublane)"

    self_attn = (q is k) and (k is v) and (q_pos is k_pos)

    if block_b is None:
        block_b = _default_block_b(Bv, Lv)
    assert Bv % block_b == 0
    grid = (Bv // block_b,)
    rows = block_b * Lv

    # fold 1/sqrt(d_k)/sqrt(2) (fg==1) into the q and q_pos projections
    scale = (1.0 / math.sqrt(dh)) / math.sqrt(2.0)
    bf16 = jnp.bfloat16
    Wqkv = jnp.concatenate([params["wq"] * scale, params["wk"], params["wv"]],
                           axis=1).astype(bf16)                       # (D, 3D)
    Bqkv = jnp.concatenate([params["bq"] * scale, params["bk"], params["bv"]]
                           ).reshape(1, 3 * Dv).astype(jnp.float32)   # (1, 3D)
    Wpos = jnp.concatenate([params["wqp"] * scale, params["wkp"]],
                           axis=1).astype(bf16)                       # (D, 2D)
    Bpos = jnp.concatenate([params["bqp"] * scale, params["bkp"]]
                           ).reshape(1, 2 * Dv).astype(jnp.float32)   # (1, 2D)
    Wm = params["wm"].astype(bf16)                                    # (D, D)
    Bm = params["bm"].reshape(1, Dv).astype(jnp.float32)              # (1, D)

    act_spec = pl.BlockSpec((rows, Dv), lambda i: (i, 0))
    mask_spec = pl.BlockSpec((block_b, 1, Lv), lambda i: (i, 0, 0))
    # grid-invariant params (constant index_map -> fetched once).  At production
    # D, consider pipeline_mode=pl.Buffered(1) here to drop the second buffer.
    param_specs = [pl.BlockSpec((Dv, 3 * Dv), lambda i: (0, 0)),
                   pl.BlockSpec((1, 3 * Dv), lambda i: (0, 0)),
                   pl.BlockSpec((Dv, 2 * Dv), lambda i: (0, 0)),
                   pl.BlockSpec((1, 2 * Dv), lambda i: (0, 0)),
                   pl.BlockSpec((Dv, Dv), lambda i: (0, 0)),
                   pl.BlockSpec((1, Dv), lambda i: (0, 0))]
    param_args = (Wqkv, Bqkv, Wpos, Bpos, Wm, Bm)

    # outputs: atted as a (B*L, D) row-major slab (single lane-dense store per
    # step); pos_scores head-major so the kernel writes pos_ref[h] directly.
    out_shape = (jax.ShapeDtypeStruct((Bv * Lv, Dv), jnp.float32),
                 jax.ShapeDtypeStruct((heads, Bv, Lv, Lv), jnp.float32))
    out_specs = (pl.BlockSpec((rows, Dv), lambda i: (i, 0)),
                 pl.BlockSpec((heads, block_b, Lv, Lv), lambda i: (0, i, 0, 0)))

    kern_kw = dict(bb=block_b, seq=Lv, dim=Dv, heads=heads, dh=dh)
    if self_attn:
        kern = partial(_mhatt_self_kernel, **kern_kw)
        x2 = q.reshape(Bv * Lv, Dv)
        xp2 = q_pos.reshape(Bv * Lv, Dv)
        args = (x2, xp2, mask) + param_args
        in_specs = [act_spec, act_spec, mask_spec] + param_specs
    else:
        kern = partial(_mhatt_cross_kernel, **kern_kw)
        q2, k2, v2, qp2, kp2 = [t.reshape(Bv * Lv, Dv)
                                for t in (q, k, v, q_pos, k_pos)]
        args = (q2, k2, v2, qp2, kp2, mask) + param_args
        in_specs = [act_spec] * 5 + [mask_spec] + param_specs

    # explicit VMEM budget from the real (double-buffered) footprint, with
    # headroom, never below the 32 MiB default.
    n_act = 2 if self_attn else 5
    footprint = 2 * (n_act * rows * Dv * 4                # activation slabs (f32)
                     + block_b * Lv * 4                   # mask
                     + 6 * Dv * Dv * 2 + 6 * Dv * 4       # bf16 weights + f32 biases
                     + rows * Dv * 4                      # atted out
                     + heads * block_b * Lv * Lv * 4)     # pos out
    vmem_limit = int(min(128 * 1024 * 1024, max(32 * 1024 * 1024, 2 * footprint)))

    atted2, pos_h = pl.pallas_call(
        kern,
        out_shape=out_shape,
        grid_spec=pltpu.PrefetchScalarGridSpec(
            num_scalar_prefetch=0,
            grid=grid,
            in_specs=in_specs,
            out_specs=out_specs),
        compiler_params=pltpu.CompilerParams(
            dimension_semantics=("parallel",),
            vmem_limit_bytes=vmem_limit),
    )(*args)

    # head-major -> module layout (cheap XLA-side transpose on a small array)
    return atted2.reshape(Bv, Lv, Dv), jnp.transpose(pos_h, (1, 0, 2, 3))


# ---- pure-JAX reference (mirrors the torch module, fg == 1) ------------------
def mhatt_reference(v, k, q, mask, q_pos, k_pos, p):
    Bv, Lv, Dv = q.shape

    def lin(x, w, b):
        return x @ w + b

    def split(x):
        return x.reshape(Bv, Lv, HEADS, DH).transpose(0, 2, 1, 3)

    qh = split(lin(q, p["wq"], p["bq"]))
    kh = split(lin(k, p["wk"], p["bk"]))
    vh = split(lin(v, p["wv"], p["bv"]))
    qph = split(lin(q_pos, p["wqp"], p["bqp"]))
    kph = split(lin(k_pos, p["wkp"], p["bkp"]))

    scores = jnp.einsum("bhqd,bhkd->bhqk", qh, kh) / math.sqrt(DH)
    pos_scores = jnp.einsum("bhqd,bhkd->bhqk", qph, kph) / math.sqrt(DH)
    scores = scores / math.sqrt(2.0)
    pos_scores = pos_scores / math.sqrt(2.0)

    scores = scores + pos_scores
    scores = jnp.where(mask[:, None, :, :] > 0.0, -1e9, scores)   # masked_fill
    att = jax.nn.softmax(scores, axis=-1)                         # dropout == identity
    atted = jnp.einsum("bhqk,bhkd->bqhd", att, vh).reshape(Bv, Lv, Dv)
    atted = lin(atted, p["wm"], p["bm"])
    return atted, pos_scores


PARAM_W = ["wq", "wk", "wv", "wqp", "wkp", "wm"]
PARAM_B = ["bq", "bk", "bv", "bqp", "bkp", "bm"]


def init_params(key):
    ks = jax.random.split(key, 12)
    s = 0.05
    p = {}
    for i, (wn, bn) in enumerate(zip(PARAM_W, PARAM_B)):
        p[wn] = jax.random.normal(ks[2 * i], (HIDDEN, HIDDEN), jnp.float32) * s
        p[bn] = jax.random.normal(ks[2 * i + 1], (HIDDEN,), jnp.float32) * s
    return p


if __name__ == "__main__":
    key = jax.random.PRNGKey(0)
    kx, kpos, kpar, kk, kv, kkp = jax.random.split(key, 6)

    params = init_params(kpar)

    x = jax.random.normal(kx, (B, L, HIDDEN), jnp.float32)
    x_pos = jax.random.normal(kpos, (B, L, HIDDEN), jnp.float32)
    # mask: 1.0 == masked (torch bool mask for masked_fill); mask last 2 keys of batch 1
    mask = jnp.zeros((B, 1, L), jnp.float32).at[1, 0, L - 2:].set(1.0)

    # bf16 MXU operands in the kernel -> compare against the f32 reference with
    # a bf16-level tolerance
    tol = dict(atol=4e-3, rtol=4e-2)

    # 1) self-attention fast path (v = k = q = x, q_pos = k_pos = x_pos, fg = 1)
    atted, pos_scores = mhatt_forward(x, x, x, mask, x_pos, x_pos, params)
    jax.block_until_ready((atted, pos_scores))
    ref_att, ref_pos = mhatt_reference(x, x, x, mask, x_pos, x_pos, params)
    assert jnp.allclose(atted, ref_att, **tol), "self-attn atted mismatch"
    assert jnp.allclose(pos_scores, ref_pos, **tol), "self-attn pos_scores mismatch"

    # 2) general (cross-attention) path with distinct v/k/q and k_pos
    xk = jax.random.normal(kk, (B, L, HIDDEN), jnp.float32)
    xv = jax.random.normal(kv, (B, L, HIDDEN), jnp.float32)
    xkp = jax.random.normal(kkp, (B, L, HIDDEN), jnp.float32)
    atted2, pos2 = mhatt_forward(xv, xk, x, mask, x_pos, xkp, params)
    jax.block_until_ready((atted2, pos2))
    ref_att2, ref_pos2 = mhatt_reference(xv, xk, x, mask, x_pos, xkp, params)
    assert jnp.allclose(atted2, ref_att2, **tol), "cross-attn atted mismatch"
    assert jnp.allclose(pos2, ref_pos2, **tol), "cross-attn pos_scores mismatch"

    print("KERNEL_OK")
</pallas_src>

<mosaic_0001>
module attributes {stable_mosaic.version = 11 : i64} {
  func.func @_mhatt_self_kernel(%arg0: i32, %arg1: memref<8x32xf32, #tpu.memory_space<vmem>>, %arg2: memref<8x32xf32, #tpu.memory_space<vmem>>, %arg3: memref<1x1x8xf32, #tpu.memory_space<vmem>>, %arg4: memref<32x96xbf16, #tpu.memory_space<vmem>>, %arg5: memref<1x96xf32, #tpu.memory_space<vmem>>, %arg6: memref<32x64xbf16, #tpu.memory_space<vmem>>, %arg7: memref<1x64xf32, #tpu.memory_space<vmem>>, %arg8: memref<32x32xbf16, #tpu.memory_space<vmem>>, %arg9: memref<1x32xf32, #tpu.memory_space<vmem>>, %arg10: memref<8x32xf32, #tpu.memory_space<vmem>>, %arg11: memref<4x1x8x8xf32, #tpu.memory_space<vmem>>) attributes {dimension_semantics = [#tpu.dimension_semantics<parallel>], iteration_bounds = array<i64: 2>, scalar_prefetch = 0 : i64, scratch_operands = 0 : i64, tpu.core_type = #tpu.core_type<tc>, window_params = [{transform_indices = @transform_0, window_bounds = array<i64: 8, 32>}, {transform_indices = @transform_1, window_bounds = array<i64: 8, 32>}, {transform_indices = @transform_2, window_bounds = array<i64: 1, 1, 8>}, {pipeline_mode = #tpu.pipeline_mode<synchronous>, transform_indices = @transform_3, window_bounds = array<i64: 32, 96>}, {pipeline_mode = #tpu.pipeline_mode<synchronous>, transform_indices = @transform_4, window_bounds = array<i64: 1, 96>}, {pipeline_mode = #tpu.pipeline_mode<synchronous>, transform_indices = @transform_5, window_bounds = array<i64: 32, 64>}, {pipeline_mode = #tpu.pipeline_mode<synchronous>, transform_indices = @transform_6, window_bounds = array<i64: 1, 64>}, {pipeline_mode = #tpu.pipeline_mode<synchronous>, transform_indices = @transform_7, window_bounds = array<i64: 32, 32>}, {pipeline_mode = #tpu.pipeline_mode<synchronous>, transform_indices = @transform_8, window_bounds = array<i64: 1, 32>}, {transform_indices = @transform_9, window_bounds = array<i64: 8, 32>}, {transform_indices = @transform_10, window_bounds = array<i64: 4, 1, 8, 8>}]} {
    %c0 = arith.constant 0 : index
    %c0_0 = arith.constant 0 : index
    %0 = vector.load %arg1[%c0, %c0_0] : memref<8x32xf32, #tpu.memory_space<vmem>>, vector<8x32xf32>
    %1 = arith.truncf %0 : vector<8x32xf32> to vector<8x32xbf16>
    %c0_1 = arith.constant 0 : index
    %c0_2 = arith.constant 0 : index
    %2 = vector.load %arg2[%c0_1, %c0_2] : memref<8x32xf32, #tpu.memory_space<vmem>>, vector<8x32xf32>
    %3 = arith.truncf %2 : vector<8x32xf32> to vector<8x32xbf16>
    %c0_3 = arith.constant 0 : index
    %c0_4 = arith.constant 0 : index
    %4 = vector.load %arg4[%c0_3, %c0_4] : memref<32x96xbf16, #tpu.memory_space<vmem>>, vector<32x96xbf16>
    %cst = arith.constant dense<0.000000e+00> : vector<8x96xf32>
    %5 = tpu.matmul %1, %4, %cst {dimension_numbers = #tpu.dot_dimension_numbers<[1], [0], [0], [1], [0, 0, 1, 1], [], []>} : vector<8x32xbf16>, vector<32x96xbf16>, vector<8x96xf32> -> vector<8x96xf32>
    %c0_5 = arith.constant 0 : index
    %c0_6 = arith.constant 0 : index
    %6 = vector.load %arg5[%c0_5, %c0_6] : memref<1x96xf32, #tpu.memory_space<vmem>>, vector<1x96xf32>
    %7 = vector.broadcast %6 : vector<1x96xf32> to vector<8x96xf32>
    %8 = arith.addf %5, %7 : vector<8x96xf32>
    %c0_7 = arith.constant 0 : index
    %c0_8 = arith.constant 0 : index
    %9 = vector.load %arg6[%c0_7, %c0_8] : memref<32x64xbf16, #tpu.memory_space<vmem>>, vector<32x64xbf16>
    %cst_9 = arith.constant dense<0.000000e+00> : vector<8x64xf32>
    %10 = tpu.matmul %3, %9, %cst_9 {dimension_numbers = #tpu.dot_dimension_numbers<[1], [0], [0], [1], [0, 0, 1, 1], [], []>} : vector<8x32xbf16>, vector<32x64xbf16>, vector<8x64xf32> -> vector<8x64xf32>
    %c0_10 = arith.constant 0 : index
    %c0_11 = arith.constant 0 : index
    %11 = vector.load %arg7[%c0_10, %c0_11] : memref<1x64xf32, #tpu.memory_space<vmem>>, vector<1x64xf32>
    %12 = vector.broadcast %11 : vector<1x64xf32> to vector<8x64xf32>
    %13 = arith.addf %10, %12 : vector<8x64xf32>
    %14 = vector.extract_strided_slice %8 {offsets = [0, 0], sizes = [8, 32], strides = [1, 1]} : vector<8x96xf32> to vector<8x32xf32>
    %15 = vector.extract_strided_slice %8 {offsets = [0, 32], sizes = [8, 32], strides = [1, 1]} : vector<8x96xf32> to vector<8x32xf32>
    %16 = vector.extract_strided_slice %8 {offsets = [0, 64], sizes = [8, 32], strides = [1, 1]} : vector<8x96xf32> to vector<8x32xf32>
    %17 = vector.extract_strided_slice %13 {offsets = [0, 0], sizes = [8, 32], strides = [1, 1]} : vector<8x64xf32> to vector<8x32xf32>
    %18 = vector.extract_strided_slice %13 {offsets = [0, 32], sizes = [8, 32], strides = [1, 1]} : vector<8x64xf32> to vector<8x32xf32>
    %19 = vector.shape_cast %14 : vector<8x32xf32> to vector<1x8x32xf32>
    %20 = vector.shape_cast %15 : vector<8x32xf32> to vector<1x8x32xf32>
    %21 = vector.shape_cast %16 : vector<8x32xf32> to vector<1x8x32xf32>
    %22 = vector.shape_cast %17 : vector<8x32xf32> to vector<1x8x32xf32>
    %23 = vector.shape_cast %18 : vector<8x32xf32> to vector<1x8x32xf32>
    %c0_12 = arith.constant 0 : index
    %c0_13 = arith.constant 0 : index
    %c0_14 = arith.constant 0 : index
    %24 = vector.load %arg3[%c0_12, %c0_13, %c0_14] : memref<1x1x8xf32, #tpu.memory_space<vmem>>, vector<1x1x8xf32>
    %cst_15 = arith.constant 0.000000e+00 : f32
    %25 = vector.broadcast %cst_15 : f32 to vector<1x1x8xf32>
    %26 = arith.cmpf ogt, %24, %25 : vector<1x1x8xf32>
    %cst_16 = arith.constant 0.000000e+00 : f32
    %27 = vector.broadcast %cst_16 : f32 to vector<8x32xf32>
    %28 = vector.extract_strided_slice %19 {offsets = [0, 0, 0], sizes = [1, 8, 8], strides = [1, 1, 1]} : vector<1x8x32xf32> to vector<1x8x8xf32>
    %29 = arith.truncf %28 : vector<1x8x8xf32> to vector<1x8x8xbf16>
    %30 = vector.extract_strided_slice %20 {offsets = [0, 0, 0], sizes = [1, 8, 8], strides = [1, 1, 1]} : vector<1x8x32xf32> to vector<1x8x8xf32>
    %31 = arith.truncf %30 : vector<1x8x8xf32> to vector<1x8x8xbf16>
    "tpu.trace_start"() <{level = 10 : i32, message = "bqd,bkd->bqk"}> : () -> ()
    %cst_17 = arith.constant dense<0.000000e+00> : vector<1x8x8xf32>
    %32 = tpu.matmul %29, %31, %cst_17 {dimension_numbers = #tpu.dot_dimension_numbers<[2], [2], [1], [1], [0, 0, 0, 1, 1, 1], [0], [0]>} : vector<1x8x8xbf16>, vector<1x8x8xbf16>, vector<1x8x8xf32> -> vector<1x8x8xf32>
    "tpu.trace_stop"() : () -> ()
    %33 = vector.extract_strided_slice %22 {offsets = [0, 0, 0], sizes = [1, 8, 8], strides = [1, 1, 1]} : vector<1x8x32xf32> to vector<1x8x8xf32>
    %34 = arith.truncf %33 : vector<1x8x8xf32> to vector<1x8x8xbf16>
    %35 = vector.extract_strided_slice %23 {offsets = [0, 0, 0], sizes = [1, 8, 8], strides = [1, 1, 1]} : vector<1x8x32xf32> to vector<1x8x8xf32>
    %36 = arith.truncf %35 : vector<1x8x8xf32> to vector<1x8x8xbf16>
    "tpu.trace_start"() <{level = 10 : i32, message = "bqd,bkd->bqk"}> : () -> ()
    %cst_18 = arith.constant dense<0.000000e+00> : vector<1x8x8xf32>
    %37 = tpu.matmul %34, %36, %cst_18 {dimension_numbers = #tpu.dot_dimension_numbers<[2], [2], [1], [1], [0, 0, 0, 1, 1, 1], [0], [0]>} : vector<1x8x8xbf16>, vector<1x8x8xbf16>, vector<1x8x8xf32> -> vector<1x8x8xf32>
    "tpu.trace_stop"() : () -> ()
    %c0_19 = arith.constant 0 : index
    %c0_20 = arith.constant 0 : index
    %c0_21 = arith.constant 0 : index
    %c0_22 = arith.constant 0 : index
    %38 = vector.load %arg11[%c0_19, %c0_20, %c0_21, %c0_22] : memref<4x1x8x8xf32, #tpu.memory_space<vmem>>, vector<1x1x8x8xf32>
    %39 = vector.shape_cast %38 : vector<1x1x8x8xf32> to vector<1x8x8xf32>
    %40 = vector.shape_cast %37 : vector<1x8x8xf32> to vector<1x1x8x8xf32>
    tpu.vector_store %arg11[%c0_19, %c0_20, %c0_21, %c0_22], %40 {strides = array<i32>} : memref<4x1x8x8xf32, #tpu.memory_space<vmem>>, vector<1x1x8x8xf32>,
    %41 = arith.addf %32, %37 : vector<1x8x8xf32>
    %cst_23 = arith.constant -1.000000e+09 : f32
    %42 = vector.shape_cast %26 : vector<1x1x8xi1> to vector<1x1x8xi1>
    %43 = vector.broadcast %42 : vector<1x1x8xi1> to vector<1x8x8xi1>
    %44 = vector.broadcast %cst_23 : f32 to vector<1x8x8xf32>
    %45 = arith.select %43, %44, %41 : vector<1x8x8xi1>, vector<1x8x8xf32>
    %cst_24 = arith.constant dense<0xFF800000> : vector<1x8xf32>
    %46 = vector.multi_reduction <maximumf>, %45, %cst_24 [2] : vector<1x8x8xf32> to vector<1x8xf32>
    %47 = vector.shape_cast %46 : vector<1x8xf32> to vector<1x8x1xf32>
    %48 = vector.broadcast %47 : vector<1x8x1xf32> to vector<1x8x8xf32>
    %49 = arith.subf %45, %48 : vector<1x8x8xf32>
    %50 = math.exp %49 : vector<1x8x8xf32>
    %cst_25 = arith.constant dense<0.000000e+00> : vector<1x8xf32>
    %51 = vector.multi_reduction <add>, %50, %cst_25 [2] : vector<1x8x8xf32> to vector<1x8xf32>
    %52 = vector.shape_cast %51 : vector<1x8xf32> to vector<1x8x1xf32>
    %53 = tpu.reciprocal %52 {approx = true} : vector<1x8x1xf32> -> vector<1x8x1xf32>
    %54 = vector.broadcast %53 : vector<1x8x1xf32> to vector<1x8x8xf32>
    %55 = arith.mulf %50, %54 : vector<1x8x8xf32>
    %56 = arith.truncf %55 : vector<1x8x8xf32> to vector<1x8x8xbf16>
    %57 = vector.extract_strided_slice %21 {offsets = [0, 0, 0], sizes = [1, 8, 8], strides = [1, 1, 1]} : vector<1x8x32xf32> to vector<1x8x8xf32>
    %58 = arith.truncf %57 : vector<1x8x8xf32> to vector<1x8x8xbf16>
    "tpu.trace_start"() <{level = 10 : i32, message = "bqk,bkd->bqd"}> : () -> ()
    %cst_26 = arith.constant dense<0.000000e+00> : vector<1x8x8xf32>
    %59 = tpu.matmul %56, %58, %cst_26 {dimension_numbers = #tpu.dot_dimension_numbers<[2], [1], [1], [2], [0, 0, 0, 1, 1, 2], [0], [0]>} : vector<1x8x8xbf16>, vector<1x8x8xbf16>, vector<1x8x8xf32> -> vector<1x8x8xf32>
    "tpu.trace_stop"() : () -> ()
    %60 = vector.shape_cast %59 : vector<1x8x8xf32> to vector<8x8xf32>
    %61 = arith.truncf %60 : vector<8x8xf32> to vector<8x8xbf16>
    %c0_27 = arith.constant 0 : index
    %c0_28 = arith.constant 0 : index
    %62 = vector.load %arg8[%c0_27, %c0_28] : memref<32x32xbf16, #tpu.memory_space<vmem>>, vector<8x32xbf16>
    %cst_29 = arith.constant dense<0.000000e+00> : vector<8x32xf32>
    %63 = tpu.matmul %61, %62, %cst_29 {dimension_numbers = #tpu.dot_dimension_numbers<[1], [0], [0], [1], [0, 0, 1, 1], [], []>} : vector<8x8xbf16>, vector<8x32xbf16>, vector<8x32xf32> -> vector<8x32xf32>
    %64 = arith.addf %27, %63 : vector<8x32xf32>
    %65 = vector.extract_strided_slice %19 {offsets = [0, 0, 8], sizes = [1, 8, 8], strides = [1, 1, 1]} : vector<1x8x32xf32> to vector<1x8x8xf32>
    %66 = arith.truncf %65 : vector<1x8x8xf32> to vector<1x8x8xbf16>
    %67 = vector.extract_strided_slice %20 {offsets = [0, 0, 8], sizes = [1, 8, 8], strides = [1, 1, 1]} : vector<1x8x32xf32> to vector<1x8x8xf32>
    %68 = arith.truncf %67 : vector<1x8x8xf32> to vector<1x8x8xbf16>
    "tpu.trace_start"() <{level = 10 : i32, message = "bqd,bkd->bqk"}> : () -> ()
    %cst_30 = arith.constant dense<0.000000e+00> : vector<1x8x8xf32>
    %69 = tpu.matmul %66, %68, %cst_30 {dimension_numbers = #tpu.dot_dimension_numbers<[2], [2], [1], [1], [0, 0, 0, 1, 1, 1], [0], [0]>} : vector<1x8x8xbf16>, vector<1x8x8xbf16>, vector<1x8x8xf32> -> vector<1x8x8xf32>
    "tpu.trace_stop"() : () -> ()
    %70 = vector.extract_strided_slice %22 {offsets = [0, 0, 8], sizes = [1, 8, 8], strides = [1, 1, 1]} : vector<1x8x32xf32> to vector<1x8x8xf32>
    %71 = arith.truncf %70 : vector<1x8x8xf32> to vector<1x8x8xbf16>
    %72 = vector.extract_strided_slice %23 {offsets = [0, 0, 8], sizes = [1, 8, 8], strides = [1, 1, 1]} : vector<1x8x32xf32> to vector<1x8x8xf32>
    %73 = arith.truncf %72 : vector<1x8x8xf32> to vector<1x8x8xbf16>
    "tpu.trace_start"() <{level = 10 : i32, message = "bqd,bkd->bqk"}> : () -> ()
    %cst_31 = arith.constant dense<0.000000e+00> : vector<1x8x8xf32>
    %74 = tpu.matmul %71, %73, %cst_31 {dimension_numbers = #tpu.dot_dimension_numbers<[2], [2], [1], [1], [0, 0, 0, 1, 1, 1], [0], [0]>} : vector<1x8x8xbf16>, vector<1x8x8xbf16>, vector<1x8x8xf32> -> vector<1x8x8xf32>
    "tpu.trace_stop"() : () -> ()
    %c1 = arith.constant 1 : index
    %c0_32 = arith.constant 0 : index
    %c0_33 = arith.constant 0 : index
    %c0_34 = arith.constant 0 : index
    %75 = vector.load %arg11[%c1, %c0_32, %c0_33, %c0_34] : memref<4x1x8x8xf32, #tpu.memory_space<vmem>>, vector<1x1x8x8xf32>
    %76 = vector.shape_cast %75 : vector<1x1x8x8xf32> to vector<1x8x8xf32>
    %77 = vector.shape_cast %74 : vector<1x8x8xf32> to vector<1x1x8x8xf32>
    tpu.vector_store %arg11[%c1, %c0_32, %c0_33, %c0_34], %77 {strides = array<i32>} : memref<4x1x8x8xf32, #tpu.memory_space<vmem>>, vector<1x1x8x8xf32>,
    %78 = arith.addf %69, %74 : vector<1x8x8xf32>
    %cst_35 = arith.constant -1.000000e+09 : f32
    %79 = vector.shape_cast %26 : vector<1x1x8xi1> to vector<1x1x8xi1>
    %80 = vector.broadcast %79 : vector<1x1x8xi1> to vector<1x8x8xi1>
    %81 = vector.broadcast %cst_35 : f32 to vector<1x8x8xf32>
    %82 = arith.select %80, %81, %78 : vector<1x8x8xi1>, vector<1x8x8xf32>
    %cst_36 = arith.constant dense<0xFF800000> : vector<1x8xf32>
    %83 = vector.multi_reduction <maximumf>, %82, %cst_36 [2] : vector<1x8x8xf32> to vector<1x8xf32>
    %84 = vector.shape_cast %83 : vector<1x8xf32> to vector<1x8x1xf32>
    %85 = vector.broadcast %84 : vector<1x8x1xf32> to vector<1x8x8xf32>
    %86 = arith.subf %82, %85 : vector<1x8x8xf32>
    %87 = math.exp %86 : vector<1x8x8xf32>
    %cst_37 = arith.constant dense<0.000000e+00> : vector<1x8xf32>
    %88 = vector.multi_reduction <add>, %87, %cst_37 [2] : vector<1x8x8xf32> to vector<1x8xf32>
    %89 = vector.shape_cast %88 : vector<1x8xf32> to vector<1x8x1xf32>
    %90 = tpu.reciprocal %89 {approx = true} : vector<1x8x1xf32> -> vector<1x8x1xf32>
    %91 = vector.broadcast %90 : vector<1x8x1xf32> to vector<1x8x8xf32>
    %92 = arith.mulf %87, %91 : vector<1x8x8xf32>
    %93 = arith.truncf %92 : vector<1x8x8xf32> to vector<1x8x8xbf16>
    %94 = vector.extract_strided_slice %21 {offsets = [0, 0, 8], sizes = [1, 8, 8], strides = [1, 1, 1]} : vector<1x8x32xf32> to vector<1x8x8xf32>
    %95 = arith.truncf %94 : vector<1x8x8xf32> to vector<1x8x8xbf16>
    "tpu.trace_start"() <{level = 10 : i32, message = "bqk,bkd->bqd"}> : () -> ()
    %cst_38 = arith.constant dense<0.000000e+00> : vector<1x8x8xf32>
    %96 = tpu.matmul %93, %95, %cst_38 {dimension_numbers = #tpu.dot_dimension_numbers<[2], [1], [1], [2], [0, 0, 0, 1, 1, 2], [0], [0]>} : vector<1x8x8xbf16>, vector<1x8x8xbf16>, vector<1x8x8xf32> -> vector<1x8x8xf32>
    "tpu.trace_stop"() : () -> ()
    %97 = vector.shape_cast %96 : vector<1x8x8xf32> to vector<8x8xf32>
    %98 = arith.truncf %97 : vector<8x8xf32> to vector<8x8xbf16>
    %c8 = arith.constant 8 : index
    %c0_39 = arith.constant 0 : index
    %99 = vector.load %arg8[%c8, %c0_39] : memref<32x32xbf16, #tpu.memory_space<vmem>>, vector<8x32xbf16>
    %cst_40 = arith.constant dense<0.000000e+00> : vector<8x32xf32>
    %100 = tpu.matmul %98, %99, %cst_40 {dimension_numbers = #tpu.dot_dimension_numbers<[1], [0], [0], [1], [0, 0, 1, 1], [], []>} : vector<8x8xbf16>, vector<8x32xbf16>, vector<8x32xf32> -> vector<8x32xf32>
    %101 = arith.addf %64, %100 : vector<8x32xf32>
    %102 = vector.extract_strided_slice %19 {offsets = [0, 0, 16], sizes = [1, 8, 8], strides = [1, 1, 1]} : vector<1x8x32xf32> to vector<1x8x8xf32>
    %103 = arith.truncf %102 : vector<1x8x8xf32> to vector<1x8x8xbf16>
    %104 = vector.extract_strided_slice %20 {offsets = [0, 0, 16], sizes = [1, 8, 8], strides = [1, 1, 1]} : vector<1x8x32xf32> to vector<1x8x8xf32>
    %105 = arith.truncf %104 : vector<1x8x8xf32> to vector<1x8x8xbf16>
    "tpu.trace_start"() <{level = 10 : i32, message = "bqd,bkd->bqk"}> : () -> ()
    %cst_41 = arith.constant dense<0.000000e+00> : vector<1x8x8xf32>
    %106 = tpu.matmul %103, %105, %cst_41 {dimension_numbers = #tpu.dot_dimension_numbers<[2], [2], [1], [1], [0, 0, 0, 1, 1, 1], [0], [0]>} : vector<1x8x8xbf16>, vector<1x8x8xbf16>, vector<1x8x8xf32> -> vector<1x8x8xf32>
    "tpu.trace_stop"() : () -> ()
    %107 = vector.extract_strided_slice %22 {offsets = [0, 0, 16], sizes = [1, 8, 8], strides = [1, 1, 1]} : vector<1x8x32xf32> to vector<1x8x8xf32>
    %108 = arith.truncf %107 : vector<1x8x8xf32> to vector<1x8x8xbf16>
    %109 = vector.extract_strided_slice %23 {offsets = [0, 0, 16], sizes = [1, 8, 8], strides = [1, 1, 1]} : vector<1x8x32xf32> to vector<1x8x8xf32>
    %110 = arith.truncf %109 : vector<1x8x8xf32> to vector<1x8x8xbf16>
    "tpu.trace_start"() <{level = 10 : i32, message = "bqd,bkd->bqk"}> : () -> ()
    %cst_42 = arith.constant dense<0.000000e+00> : vector<1x8x8xf32>
    %111 = tpu.matmul %108, %110, %cst_42 {dimension_numbers = #tpu.dot_dimension_numbers<[2], [2], [1], [1], [0, 0, 0, 1, 1, 1], [0], [0]>} : vector<1x8x8xbf16>, vector<1x8x8xbf16>, vector<1x8x8xf32> -> vector<1x8x8xf32>
    "tpu.trace_stop"() : () -> ()
    %c2 = arith.constant 2 : index
    %c0_43 = arith.constant 0 : index
    %c0_44 = arith.constant 0 : index
    %c0_45 = arith.constant 0 : index
    %112 = vector.load %arg11[%c2, %c0_43, %c0_44, %c0_45] : memref<4x1x8x8xf32, #tpu.memory_space<vmem>>, vector<1x1x8x8xf32>
    %113 = vector.shape_cast %112 : vector<1x1x8x8xf32> to vector<1x8x8xf32>
    %114 = vector.shape_cast %111 : vector<1x8x8xf32> to vector<1x1x8x8xf32>
    tpu.vector_store %arg11[%c2, %c0_43, %c0_44, %c0_45], %114 {strides = array<i32>} : memref<4x1x8x8xf32, #tpu.memory_space<vmem>>, vector<1x1x8x8xf32>,
    %115 = arith.addf %106, %111 : vector<1x8x8xf32>
    %cst_46 = arith.constant -1.000000e+09 : f32
    %116 = vector.shape_cast %26 : vector<1x1x8xi1> to vector<1x1x8xi1>
    %117 = vector.broadcast %116 : vector<1x1x8xi1> to vector<1x8x8xi1>
    %118 = vector.broadcast %cst_46 : f32 to vector<1x8x8xf32>
    %119 = arith.select %117, %118, %115 : vector<1x8x8xi1>, vector<1x8x8xf32>
    %cst_47 = arith.constant dense<0xFF800000> : vector<1x8xf32>
    %120 = vector.multi_reduction <maximumf>, %119, %cst_47 [2] : vector<1x8x8xf32> to vector<1x8xf32>
    %121 = vector.shape_cast %120 : vector<1x8xf32> to vector<1x8x1xf32>
    %122 = vector.broadcast %121 : vector<1x8x1xf32> to vector<1x8x8xf32>
    %123 = arith.subf %119, %122 : vector<1x8x8xf32>
    %124 = math.exp %123 : vector<1x8x8xf32>
    %cst_48 = arith.constant dense<0.000000e+00> : vector<1x8xf32>
    %125 = vector.multi_reduction <add>, %124, %cst_48 [2] : vector<1x8x8xf32> to vector<1x8xf32>
    %126 = vector.shape_cast %125 : vector<1x8xf32> to vector<1x8x1xf32>
    %127 = tpu.reciprocal %126 {approx = true} : vector<1x8x1xf32> -> vector<1x8x1xf32>
    %128 = vector.broadcast %127 : vector<1x8x1xf32> to vector<1x8x8xf32>
    %129 = arith.mulf %124, %128 : vector<1x8x8xf32>
    %130 = arith.truncf %129 : vector<1x8x8xf32> to vector<1x8x8xbf16>
    %131 = vector.extract_strided_slice %21 {offsets = [0, 0, 16], sizes = [1, 8, 8], strides = [1, 1, 1]} : vector<1x8x32xf32> to vector<1x8x8xf32>
    %132 = arith.truncf %131 : vector<1x8x8xf32> to vector<1x8x8xbf16>
    "tpu.trace_start"() <{level = 10 : i32, message = "bqk,bkd->bqd"}> : () -> ()
    %cst_49 = arith.constant dense<0.000000e+00> : vector<1x8x8xf32>
    %133 = tpu.matmul %130, %132, %cst_49 {dimension_numbers = #tpu.dot_dimension_numbers<[2], [1], [1], [2], [0, 0, 0, 1, 1, 2], [0], [0]>} : vector<1x8x8xbf16>, vector<1x8x8xbf16>, vector<1x8x8xf32> -> vector<1x8x8xf32>
    "tpu.trace_stop"() : () -> ()
    %134 = vector.shape_cast %133 : vector<1x8x8xf32> to vector<8x8xf32>
    %135 = arith.truncf %134 : vector<8x8xf32> to vector<8x8xbf16>
    %c16 = arith.constant 16 : index
    %c0_50 = arith.constant 0 : index
    %136 = vector.load %arg8[%c16, %c0_50] : memref<32x32xbf16, #tpu.memory_space<vmem>>, vector<8x32xbf16>
    %cst_51 = arith.constant dense<0.000000e+00> : vector<8x32xf32>
    %137 = tpu.matmul %135, %136, %cst_51 {dimension_numbers = #tpu.dot_dimension_numbers<[1], [0], [0], [1], [0, 0, 1, 1], [], []>} : vector<8x8xbf16>, vector<8x32xbf16>, vector<8x32xf32> -> vector<8x32xf32>
    %138 = arith.addf %101, %137 : vector<8x32xf32>
    %139 = vector.extract_strided_slice %19 {offsets = [0, 0, 24], sizes = [1, 8, 8], strides = [1, 1, 1]} : vector<1x8x32xf32> to vector<1x8x8xf32>
    %140 = arith.truncf %139 : vector<1x8x8xf32> to vector<1x8x8xbf16>
    %141 = vector.extract_strided_slice %20 {offsets = [0, 0, 24], sizes = [1, 8, 8], strides = [1, 1, 1]} : vector<1x8x32xf32> to vector<1x8x8xf32>
    %142 = arith.truncf %141 : vector<1x8x8xf32> to vector<1x8x8xbf16>
    "tpu.trace_start"() <{level = 10 : i32, message = "bqd,bkd->bqk"}> : () -> ()
    %cst_52 = arith.constant dense<0.000000e+00> : vector<1x8x8xf32>
    %143 = tpu.matmul %140, %142, %cst_52 {dimension_numbers = #tpu.dot_dimension_numbers<[2], [2], [1], [1], [0, 0, 0, 1, 1, 1], [0], [0]>} : vector<1x8x8xbf16>, vector<1x8x8xbf16>, vector<1x8x8xf32> -> vector<1x8x8xf32>
    "tpu.trace_stop"() : () -> ()
    %144 = vector.extract_strided_slice %22 {offsets = [0, 0, 24], sizes = [1, 8, 8], strides = [1, 1, 1]} : vector<1x8x32xf32> to vector<1x8x8xf32>
    %145 = arith.truncf %144 : vector<1x8x8xf32> to vector<1x8x8xbf16>
    %146 = vector.extract_strided_slice %23 {offsets = [0, 0, 24], sizes = [1, 8, 8], strides = [1, 1, 1]} : vector<1x8x32xf32> to vector<1x8x8xf32>
    %147 = arith.truncf %146 : vector<1x8x8xf32> to vector<1x8x8xbf16>
    "tpu.trace_start"() <{level = 10 : i32, message = "bqd,bkd->bqk"}> : () -> ()
    %cst_53 = arith.constant dense<0.000000e+00> : vector<1x8x8xf32>
    %148 = tpu.matmul %145, %147, %cst_53 {dimension_numbers = #tpu.dot_dimension_numbers<[2], [2], [1], [1], [0, 0, 0, 1, 1, 1], [0], [0]>} : vector<1x8x8xbf16>, vector<1x8x8xbf16>, vector<1x8x8xf32> -> vector<1x8x8xf32>
    "tpu.trace_stop"() : () -> ()
    %c3 = arith.constant 3 : index
    %c0_54 = arith.constant 0 : index
    %c0_55 = arith.constant 0 : index
    %c0_56 = arith.constant 0 : index
    %149 = vector.load %arg11[%c3, %c0_54, %c0_55, %c0_56] : memref<4x1x8x8xf32, #tpu.memory_space<vmem>>, vector<1x1x8x8xf32>
    %150 = vector.shape_cast %149 : vector<1x1x8x8xf32> to vector<1x8x8xf32>
    %151 = vector.shape_cast %148 : vector<1x8x8xf32> to vector<1x1x8x8xf32>
    tpu.vector_store %arg11[%c3, %c0_54, %c0_55, %c0_56], %151 {strides = array<i32>} : memref<4x1x8x8xf32, #tpu.memory_space<vmem>>, vector<1x1x8x8xf32>,
    %152 = arith.addf %143, %148 : vector<1x8x8xf32>
    %cst_57 = arith.constant -1.000000e+09 : f32
    %153 = vector.shape_cast %26 : vector<1x1x8xi1> to vector<1x1x8xi1>
    %154 = vector.broadcast %153 : vector<1x1x8xi1> to vector<1x8x8xi1>
    %155 = vector.broadcast %cst_57 : f32 to vector<1x8x8xf32>
    %156 = arith.select %154, %155, %152 : vector<1x8x8xi1>, vector<1x8x8xf32>
    %cst_58 = arith.constant dense<0xFF800000> : vector<1x8xf32>
    %157 = vector.multi_reduction <maximumf>, %156, %cst_58 [2] : vector<1x8x8xf32> to vector<1x8xf32>
    %158 = vector.shape_cast %157 : vector<1x8xf32> to vector<1x8x1xf32>
    %159 = vector.broadcast %158 : vector<1x8x1xf32> to vector<1x8x8xf32>
    %160 = arith.subf %156, %159 : vector<1x8x8xf32>
    %161 = math.exp %160 : vector<1x8x8xf32>
    %cst_59 = arith.constant dense<0.000000e+00> : vector<1x8xf32>
    %162 = vector.multi_reduction <add>, %161, %cst_59 [2] : vector<1x8x8xf32> to vector<1x8xf32>
    %163 = vector.shape_cast %162 : vector<1x8xf32> to vector<1x8x1xf32>
    %164 = tpu.reciprocal %163 {approx = true} : vector<1x8x1xf32> -> vector<1x8x1xf32>
    %165 = vector.broadcast %164 : vector<1x8x1xf32> to vector<1x8x8xf32>
    %166 = arith.mulf %161, %165 : vector<1x8x8xf32>
    %167 = arith.truncf %166 : vector<1x8x8xf32> to vector<1x8x8xbf16>
    %168 = vector.extract_strided_slice %21 {offsets = [0, 0, 24], sizes = [1, 8, 8], strides = [1, 1, 1]} : vector<1x8x32xf32> to vector<1x8x8xf32>
    %169 = arith.truncf %168 : vector<1x8x8xf32> to vector<1x8x8xbf16>
    "tpu.trace_start"() <{level = 10 : i32, message = "bqk,bkd->bqd"}> : () -> ()
    %cst_60 = arith.constant dense<0.000000e+00> : vector<1x8x8xf32>
    %170 = tpu.matmul %167, %169, %cst_60 {dimension_numbers = #tpu.dot_dimension_numbers<[2], [1], [1], [2], [0, 0, 0, 1, 1, 2], [0], [0]>} : vector<1x8x8xbf16>, vector<1x8x8xbf16>, vector<1x8x8xf32> -> vector<1x8x8xf32>
    "tpu.trace_stop"() : () -> ()
    %171 = vector.shape_cast %170 : vector<1x8x8xf32> to vector<8x8xf32>
    %172 = arith.truncf %171 : vector<8x8xf32> to vector<8x8xbf16>
    %c24 = arith.constant 24 : index
    %c0_61 = arith.constant 0 : index
    %173 = vector.load %arg8[%c24, %c0_61] : memref<32x32xbf16, #tpu.memory_space<vmem>>, vector<8x32xbf16>
    %cst_62 = arith.constant dense<0.000000e+00> : vector<8x32xf32>
    %174 = tpu.matmul %172, %173, %cst_62 {dimension_numbers = #tpu.dot_dimension_numbers<[1], [0], [0], [1], [0, 0, 1, 1], [], []>} : vector<8x8xbf16>, vector<8x32xbf16>, vector<8x32xf32> -> vector<8x32xf32>
    %175 = arith.addf %138, %174 : vector<8x32xf32>
    %c0_63 = arith.constant 0 : index
    %c0_64 = arith.constant 0 : index
    %176 = vector.load %arg9[%c0_63, %c0_64] : memref<1x32xf32, #tpu.memory_space<vmem>>, vector<1x32xf32>
    %177 = vector.broadcast %176 : vector<1x32xf32> to vector<8x32xf32>
    %178 = arith.addf %175, %177 : vector<8x32xf32>
    %c0_65 = arith.constant 0 : index
    %c0_66 = arith.constant 0 : index
    %179 = vector.load %arg10[%c0_65, %c0_66] : memref<8x32xf32, #tpu.memory_space<vmem>>, vector<8x32xf32>
    tpu.vector_store %arg10[%c0_65, %c0_66], %178 {strides = array<i32>} : memref<8x32xf32, #tpu.memory_space<vmem>>, vector<8x32xf32>,
    return
  }
  func.func @transform_0(%arg0: i32) -> (i32, i32) {
    %c0_i32 = arith.constant 0 : i32
    %c0_i32_0 = arith.constant 0 : i32
    return %arg0, %c0_i32 : i32, i32
  }
  func.func @transform_1(%arg0: i32) -> (i32, i32) {
    %c0_i32 = arith.constant 0 : i32
    %c0_i32_0 = arith.constant 0 : i32
    return %arg0, %c0_i32 : i32, i32
  }
  func.func @transform_2(%arg0: i32) -> (i32, i32, i32) {
    %c0_i32 = arith.constant 0 : i32
    %c0_i32_0 = arith.constant 0 : i32
    %c0_i32_1 = arith.constant 0 : i32
    return %arg0, %c0_i32, %c0_i32_0 : i32, i32, i32
  }
  func.func @transform_3(%arg0: i32) -> (i32, i32) {
    %c0_i32 = arith.constant 0 : i32
    %c0_i32_0 = arith.constant 0 : i32
    %c0_i32_1 = arith.constant 0 : i32
    return %c0_i32, %c0_i32_0 : i32, i32
  }
  func.func @transform_4(%arg0: i32) -> (i32, i32) {
    %c0_i32 = arith.constant 0 : i32
    %c0_i32_0 = arith.constant 0 : i32
    %c0_i32_1 = arith.constant 0 : i32
    return %c0_i32, %c0_i32_0 : i32, i32
  }
  func.func @transform_5(%arg0: i32) -> (i32, i32) {
    %c0_i32 = arith.constant 0 : i32
    %c0_i32_0 = arith.constant 0 : i32
    %c0_i32_1 = arith.constant 0 : i32
    return %c0_i32, %c0_i32_0 : i32, i32
  }
  func.func @transform_6(%arg0: i32) -> (i32, i32) {
    %c0_i32 = arith.constant 0 : i32
    %c0_i32_0 = arith.constant 0 : i32
    %c0_i32_1 = arith.constant 0 : i32
    return %c0_i32, %c0_i32_0 : i32, i32
  }
  func.func @transform_7(%arg0: i32) -> (i32, i32) {
    %c0_i32 = arith.constant 0 : i32
    %c0_i32_0 = arith.constant 0 : i32
    %c0_i32_1 = arith.constant 0 : i32
    return %c0_i32, %c0_i32_0 : i32, i32
  }
  func.func @transform_8(%arg0: i32) -> (i32, i32) {
    %c0_i32 = arith.constant 0 : i32
    %c0_i32_0 = arith.constant 0 : i32
    %c0_i32_1 = arith.constant 0 : i32
    return %c0_i32, %c0_i32_0 : i32, i32
  }
  func.func @transform_9(%arg0: i32) -> (i32, i32) {
    %c0_i32 = arith.constant 0 : i32
    %c0_i32_0 = arith.constant 0 : i32
    return %arg0, %c0_i32 : i32, i32
  }
  func.func @transform_10(%arg0: i32) -> (i32, i32, i32, i32) {
    %c0_i32 = arith.constant 0 : i32
    %c0_i32_0 = arith.constant 0 : i32
    %c0_i32_1 = arith.constant 0 : i32
    %c0_i32_2 = arith.constant 0 : i32
    return %c0_i32, %arg0, %c0_i32_0, %c0_i32_1 : i32, i32, i32, i32
  }
}

</mosaic_0001>

<llo_original>
// kernel: tpu_custom_call.1
$region0: #{tpu_custom_call.1}
  #allocation0 [shape = 'u32[]', space=smem, size = 0x4, offset = 0x4, fixed_abs, tag = 'smem constant byte address 0x4 - core index']
  #allocation1 [shape = 'u32[144,128]{1,0:T(1,128)}', space=vmem, size = 0x12000, scoped, tag = 'internal scratch']
  %s0 = inlined_call_operand.hbm [shape: f32[16,32], index: 0, kind: input, shape index: {}]
  %s1 = inlined_call_operand.hbm [shape: f32[16,32], index: 1, kind: input, shape index: {}]
  %s2 = inlined_call_operand.vmem [shape: f32[2,1,8], index: 2, kind: input, shape index: {}]
  %s3 = inlined_call_operand.hbm [shape: bf16[32,96], index: 3, kind: input, shape index: {}]
  %s4 = inlined_call_operand.hbm [shape: f32[1,96], index: 4, kind: input, shape index: {}]
  %s5 = inlined_call_operand.vmem [shape: bf16[32,64], index: 5, kind: input, shape index: {}]
  %s6 = inlined_call_operand.vmem [shape: f32[1,64], index: 6, kind: input, shape index: {}]
  %s7 = inlined_call_operand.hbm [shape: bf16[32,32], index: 7, kind: input, shape index: {}]
  %s8 = inlined_call_operand.vmem [shape: f32[1,32], index: 8, kind: input, shape index: {}]
  %s9 = inlined_call_operand.hbm [shape: f32[16,32], index: 9, kind: output, shape index: {0}]
  %s10 = inlined_call_operand.hbm [shape: f32[4,2,8,8], index: 10, kind: output, shape index: {1}]
  %11 = xla_tuple %s9, %s10
  %s12 = sld [smem:[#allocation0]]
  $region97: #{tpu_custom_call.1} parent=0
    _
  %s14 = ssub.s32 1, %s12
  %s15 = scalar_select 0, %s14, %s12
  $region1: #{tpu_custom_call.1} parent=0
    #allocation2 [shape = 'u8[8192]{0}', space=vmem, size = 0x2000, scoped, tag = 'input window, operand 0']
    #allocation3 [shape = 's32[2]{0}', space=sflag, size = 0x8, scoped, tag = 'scoped memory for tpu_custom_call.1']
    #allocation4 [shape = 's32[2]{0}', space=sflag, size = 0x8, scoped, tag = 'scoped memory for tpu_custom_call.1']
    #allocation5 [shape = 'u8[8192]{0}', space=vmem, size = 0x2000, scoped, tag = 'input window, operand 1']
    #allocation6 [shape = 's32[2]{0}', space=sflag, size = 0x8, scoped, tag = 'scoped memory for tpu_custom_call.1']
    #allocation7 [shape = 'u8[8192]{0}', space=vmem, size = 0x2000, scoped, tag = 'input window, operand 3, single buffered']
    #allocation8 [shape = 'u8[512]{0}', space=vmem, size = 0x400, scoped, tag = 'input window, operand 4, single buffered']
    #allocation9 [shape = 's32[1]{0}', space=sflag, size = 0x4, scoped, tag = 'scoped memory for tpu_custom_call.1']
    #allocation10 [shape = 'u8[8192]{0}', space=vmem, size = 0x2000, scoped, tag = 'input window, operand 7, single buffered']
    #allocation11 [shape = 'u8[8192]{0}', space=vmem, size = 0x2000, scoped, tag = 'output window, operand 0']
    #allocation12 [shape = 'u8[32768]{0}', space=vmem, size = 0x8000, scoped, tag = 'output window, operand 1']
    #allocation13 [shape = 's32[2]{0}', space=sflag, size = 0x8, scoped, tag = 'scoped memory for tpu_custom_call.1']
    %16 = vsyncpa [#allocation3], 0
    %s17 = scalar_lea.sflag [#allocation3], 1
    %18 = vsyncpa %s17, 0
    %19 = vsyncpa [#allocation6], 0
    %s20 = scalar_lea.sflag [#allocation6], 1
    %21 = vsyncpa %s20, 0
    %22 = vsyncpa [#allocation9], 0
    %23 = vsyncpa [#allocation4], 0
    %s24 = scalar_lea.sflag [#allocation4], 1
    %25 = vsyncpa %s24, 0
    %26 = vsyncpa [#allocation13], 0
    %s27 = scalar_lea.sflag [#allocation13], 1
    %28 = vsyncpa %s27, 0
    loop: start=0, step=1, limit=4
    $region2: #{tpu_custom_call.1} parent=1 // loop_pre_header
      _
    $region3: #{tpu_custom_call.1} parent=1 // loop_header
      %s30 = sphi 0, %s34
      %p31 = scmp.ge.s32.totalorder %s30, 4
      %s40 = sphi 0, %s42
      %s43 = sphi 0, %s40
      %s44 = sphi 0, %s43
      %s60 = sphi 0, %s44
      %s66 = sphi 0, %s68
      %s69 = sphi 0, %s66
      %s70 = sphi 0, %s69
      %s86 = sphi 0, %s70
      %s92 = sphi 0, %s94
      %s95 = sphi 0, %s92
      %s96 = sphi 0, %s95
      %s112 = sphi 0, %s96
      %s116 = sphi 0, %s116
      %s118 = sphi 0, %s116
      %s119 = sphi 0, %s118
      %s133 = sphi 0, %s119
      %s137 = sphi 0, %s137
      %s139 = sphi 0, %s137
      %s140 = sphi 0, %s139
      %s154 = sphi 0, %s140
      %s158 = sphi 0, %s158
      %s160 = sphi 0, %s158
      %s161 = sphi 0, %s160
      %s175 = sphi 0, %s161
      %s179 = sphi 0, %s179
      %s181 = sphi 0, %s179
      %s182 = sphi 0, %s181
      %s196 = sphi 0, %s182
      %s200 = sphi 0, %s200
      %s202 = sphi 0, %s200
      %s203 = sphi 0, %s202
      %s217 = sphi 0, %s203
      %s221 = sphi 0, %s221
      %s223 = sphi 0, %s221
      %s224 = sphi 0, %s223
      %s238 = sphi 0, %s224
      %s244 = sphi 0, %s246
      %s247 = sphi 0, %s244
      %s248 = sphi 0, %s247
      %s264 = sphi 0, %s248
      %s270 = sphi 0, %s272
      %s273 = sphi 0, %s270
      %s274 = sphi 0, %s273
      %s290 = sphi 0, %s274
    $region4: #{tpu_custom_call.1} parent=1 // loop_header_branch
      %33 = sbr.rel (%p31) target = $region8
    $region5: #{tpu_custom_call.1} parent=1 // loop_body
      %s35 = ssub.s32 %s30, 1
      %s36 = ssub.s32 %s30, 2
      %s37 = sadd.s32 %s30, 1
      %s38 = ssub.s32 %s30, %s37
      %p39 = scmp.eq.s32.totalorder %s38, 0
      %s41 = sadd.s32 %s40, 1
      %s42 = scalar_select %p39, %s40, %s41
      %p45 = pneg %p39
      %p46 = scmp.eq.s32.totalorder %s30, 1
      %p47 = por %p45, %p46
      %p48 = scmp.ne.s32.totalorder %s40, %s43
      %p49 = scmp.eq.s32.totalorder %s30, 0
      %p50 = por %p48, %p49
      %p51 = scmp.ne.s32.totalorder %s40, %s43
      %p52 = scmp.eq.s32.totalorder %s35, 1
      %p53 = por %p51, %p52
      %p54 = scmp.ne.s32.totalorder %s43, %s44
      %p55 = scmp.eq.s32.totalorder %s35, 0
      %p56 = por %p54, %p55
      %p57 = scmp.ne.s32.totalorder %s43, %s44
      %p58 = scmp.eq.s32.totalorder %s36, 1
      %p59 = por %p57, %p58
      %p61 = scmp.ne.s32.totalorder %s44, %s60
      %p62 = scmp.eq.s32.totalorder %s36, 0
      %p63 = por %p61, %p62
      %s64 = ssub.s32 %s30, %s37
      %p65 = scmp.eq.s32.totalorder %s64, 0
      %s67 = sadd.s32 %s66, 1
      %s68 = scalar_select %p65, %s66, %s67
      %p71 = pneg %p65
      %p72 = scmp.eq.s32.totalorder %s30, 1
      %p73 = por %p71, %p72
      %p74 = scmp.ne.s32.totalorder %s66, %s69
      %p75 = scmp.eq.s32.totalorder %s30, 0
      %p76 = por %p74, %p75
      %p77 = scmp.ne.s32.totalorder %s66, %s69
      %p78 = scmp.eq.s32.totalorder %s35, 1
      %p79 = por %p77, %p78
      %p80 = scmp.ne.s32.totalorder %s69, %s70
      %p81 = scmp.eq.s32.totalorder %s35, 0
      %p82 = por %p80, %p81
      %p83 = scmp.ne.s32.totalorder %s69, %s70
      %p84 = scmp.eq.s32.totalorder %s36, 1
      %p85 = por %p83, %p84
      %p87 = scmp.ne.s32.totalorder %s70, %s86
      %p88 = scmp.eq.s32.totalorder %s36, 0
      %p89 = por %p87, %p88
      %s90 = ssub.s32 %s30, %s37
      %p91 = scmp.eq.s32.totalorder %s90, 0
      %s93 = sadd.s32 %s92, 1
      %s94 = scalar_select %p91, %s92, %s93
      %p97 = pneg %p91
      %p98 = scmp.eq.s32.totalorder %s30, 1
      %p99 = por %p97, %p98
      %p100 = scmp.ne.s32.totalorder %s92, %s95
      %p101 = scmp.eq.s32.totalorder %s30, 0
      %p102 = por %p100, %p101
      %p103 = scmp.ne.s32.totalorder %s92, %s95
      %p104 = scmp.eq.s32.totalorder %s35, 1
      %p105 = por %p103, %p104
      %p106 = scmp.ne.s32.totalorder %s95, %s96
      %p107 = scmp.eq.s32.totalorder %s35, 0
      %p108 = por %p106, %p107
      %p109 = scmp.ne.s32.totalorder %s95, %s96
      %p110 = scmp.eq.s32.totalorder %s36, 1
      %p111 = por %p109, %p110
      %p113 = scmp.ne.s32.totalorder %s96, %s112
      %p114 = scmp.eq.s32.totalorder %s36, 0
      %p115 = por %p113, %p114
      %s117 = sadd.s32 %s116, 1
      %p120 = scmp.eq.s32.totalorder %s30, 1
      %p121 = scmp.ne.s32.totalorder %s116, %s118
      %p122 = scmp.eq.s32.totalorder %s30, 0
      %p123 = por %p121, %p122
      %p124 = scmp.ne.s32.totalorder %s116, %s118
      %p125 = scmp.eq.s32.totalorder %s35, 1
      %p126 = por %p124, %p125
      %p127 = scmp.ne.s32.totalorder %s118, %s119
      %p128 = scmp.eq.s32.totalorder %s35, 0
      %p129 = por %p127, %p128
      %p130 = scmp.ne.s32.totalorder %s118, %s119
      %p131 = scmp.eq.s32.totalorder %s36, 1
      %p132 = por %p130, %p131
      %p134 = scmp.ne.s32.totalorder %s119, %s133
      %p135 = scmp.eq.s32.totalorder %s36, 0
      %p136 = por %p134, %p135
      %s138 = sadd.s32 %s137, 1
      %p141 = scmp.eq.s32.totalorder %s30, 1
      %p142 = scmp.ne.s32.totalorder %s137, %s139
      %p143 = scmp.eq.s32.totalorder %s30, 0
      %p144 = por %p142, %p143
      %p145 = scmp.ne.s32.totalorder %s137, %s139
      %p146 = scmp.eq.s32.totalorder %s35, 1
      %p147 = por %p145, %p146
      %p148 = scmp.ne.s32.totalorder %s139, %s140
      %p149 = scmp.eq.s32.totalorder %s35, 0
      %p150 = por %p148, %p149
      %p151 = scmp.ne.s32.totalorder %s139, %s140
      %p152 = scmp.eq.s32.totalorder %s36, 1
      %p153 = por %p151, %p152
      %p155 = scmp.ne.s32.totalorder %s140, %s154
      %p156 = scmp.eq.s32.totalorder %s36, 0
      %p157 = por %p155, %p156
      %s159 = sadd.s32 %s158, 1
      %p162 = scmp.eq.s32.totalorder %s30, 1
      %p163 = scmp.ne.s32.totalorder %s158, %s160
      %p164 = scmp.eq.s32.totalorder %s30, 0
      %p165 = por %p163, %p164
      %p166 = scmp.ne.s32.totalorder %s158, %s160
      %p167 = scmp.eq.s32.totalorder %s35, 1
      %p168 = por %p166, %p167
      %p169 = scmp.ne.s32.totalorder %s160, %s161
      %p170 = scmp.eq.s32.totalorder %s35, 0
      %p171 = por %p169, %p170
      %p172 = scmp.ne.s32.totalorder %s160, %s161
      %p173 = scmp.eq.s32.totalorder %s36, 1
      %p174 = por %p172, %p173
      %p176 = scmp.ne.s32.totalorder %s161, %s175
      %p177 = scmp.eq.s32.totalorder %s36, 0
      %p178 = por %p176, %p177
      %s180 = sadd.s32 %s179, 1
      %p183 = scmp.eq.s32.totalorder %s30, 1
      %p184 = scmp.ne.s32.totalorder %s179, %s181
      %p185 = scmp.eq.s32.totalorder %s30, 0
      %p186 = por %p184, %p185
      %p187 = scmp.ne.s32.totalorder %s179, %s181
      %p188 = scmp.eq.s32.totalorder %s35, 1
      %p189 = por %p187, %p188
      %p190 = scmp.ne.s32.totalorder %s181, %s182
      %p191 = scmp.eq.s32.totalorder %s35, 0
      %p192 = por %p190, %p191
      %p193 = scmp.ne.s32.totalorder %s181, %s182
      %p194 = scmp.eq.s32.totalorder %s36, 1
      %p195 = por %p193, %p194
      %p197 = scmp.ne.s32.totalorder %s182, %s196
      %p198 = scmp.eq.s32.totalorder %s36, 0
      %p199 = por %p197, %p198
      %s201 = sadd.s32 %s200, 1
      %p204 = scmp.eq.s32.totalorder %s30, 1
      %p205 = scmp.ne.s32.totalorder %s200, %s202
      %p206 = scmp.eq.s32.totalorder %s30, 0
      %p207 = por %p205, %p206
      %p208 = scmp.ne.s32.totalorder %s200, %s202
      %p209 = scmp.eq.s32.totalorder %s35, 1
      %p210 = por %p208, %p209
      %p211 = scmp.ne.s32.totalorder %s202, %s203
      %p212 = scmp.eq.s32.totalorder %s35, 0
      %p213 = por %p211, %p212
      %p214 = scmp.ne.s32.totalorder %s202, %s203
      %p215 = scmp.eq.s32.totalorder %s36, 1
      %p216 = por %p214, %p215
      %p218 = scmp.ne.s32.totalorder %s203, %s217
      %p219 = scmp.eq.s32.totalorder %s36, 0
      %p220 = por %p218, %p219
      %s222 = sadd.s32 %s221, 1
      %p225 = scmp.eq.s32.totalorder %s30, 1
      %p226 = scmp.ne.s32.totalorder %s221, %s223
      %p227 = scmp.eq.s32.totalorder %s30, 0
      %p228 = por %p226, %p227
      %p229 = scmp.ne.s32.totalorder %s221, %s223
      %p230 = scmp.eq.s32.totalorder %s35, 1
      %p231 = por %p229, %p230
      %p232 = scmp.ne.s32.totalorder %s223, %s224
      %p233 = scmp.eq.s32.totalorder %s35, 0
      %p234 = por %p232, %p233
      %p235 = scmp.ne.s32.totalorder %s223, %s224
      %p236 = scmp.eq.s32.totalorder %s36, 1
      %p237 = por %p235, %p236
      %p239 = scmp.ne.s32.totalorder %s224, %s238
      %p240 = scmp.eq.s32.totalorder %s36, 0
      %p241 = por %p239, %p240
      %s242 = ssub.s32 %s30, %s37
      %p243 = scmp.eq.s32.totalorder %s242, 0
      %s245 = sadd.s32 %s244, 1
      %s246 = scalar_select %p243, %s244, %s245
      %p249 = pneg %p243
      %p250 = scmp.eq.s32.totalorder %s30, 1
      %p251 = por %p249, %p250
      %p252 = scmp.ne.s32.totalorder %s244, %s247
      %p253 = scmp.eq.s32.totalorder %s30, 0
      %p254 = por %p252, %p253
      %p255 = scmp.ne.s32.totalorder %s244, %s247
      %p256 = scmp.eq.s32.totalorder %s35, 1
      %p257 = por %p255, %p256
      %p258 = scmp.ne.s32.totalorder %s247, %s248
      %p259 = scmp.eq.s32.totalorder %s35, 0
      %p260 = por %p258, %p259
      %p261 = scmp.ne.s32.totalorder %s247, %s248
      %p262 = scmp.eq.s32.totalorder %s36, 1
      %p263 = por %p261, %p262
      %p265 = scmp.ne.s32.totalorder %s248, %s264
      %p266 = scmp.eq.s32.totalorder %s36, 0
      %p267 = por %p265, %p266
      %s268 = ssub.s32 %s30, %s37
      %p269 = scmp.eq.s32.totalorder %s268, 0
      %s271 = sadd.s32 %s270, 1
      %s272 = scalar_select %p269, %s270, %s271
      %p275 = pneg %p269
      %p276 = scmp.eq.s32.totalorder %s30, 1
      %p277 = por %p275, %p276
      %p278 = scmp.ne.s32.totalorder %s270, %s273
      %p279 = scmp.eq.s32.totalorder %s30, 0
      %p280 = por %p278, %p279
      %p281 = scmp.ne.s32.totalorder %s270, %s273
      %p282 = scmp.eq.s32.totalorder %s35, 1
      %p283 = por %p281, %p282
      %p284 = scmp.ne.s32.totalorder %s273, %s274
      %p285 = scmp.eq.s32.totalorder %s35, 0
      %p286 = por %p284, %p285
      %p287 = scmp.ne.s32.totalorder %s273, %s274
      %p288 = scmp.eq.s32.totalorder %s36, 1
      %p289 = por %p287, %p288
      %p291 = scmp.ne.s32.totalorder %s274, %s290
      %p292 = scmp.eq.s32.totalorder %s36, 0
      %p293 = por %p291, %p292
      %p294 = scmp.le.s32.totalorder 1, %s30
      %p295 = scmp.lt.s32.totalorder %s30, 3
      %p296 = pnand %p294, %p295
      %p297 = pneg %p296
      // Predicated region
      $region9: #{tpu_custom_call.1} parent=5 // pred_check
        _
      $region10: #{tpu_custom_call.1} parent=5 // pred_check_branch
        %299 = sbr.rel (%p296) target = $region12
      $region11: #{tpu_custom_call.1} parent=5 // pred_region
        %s300 = ssub.s32 %s30, 1
        // Predicated region
        $region13: #{tpu_custom_call.1} parent=11 // pred_check
          %p301 = pneg %p129
        $region14: #{tpu_custom_call.1} parent=11 // pred_check_branch
          %303 = sbr.rel (%p301) target = $region16
        $region15: #{tpu_custom_call.1} parent=11 // pred_region
          %s305 = ssub.s32 256, 256
          %306 = vsyncadd [#allocation6], %s305
          %s307 = sshll.u32 [#allocation7], 4
          %s308 = int_to_ptr.vmem [resolvable:$true] %s307
          %313 = dma.hbm_to_vmem [thread:$0]  %s3, 256, %s308, [#allocation6], 64, 64, 4
        $region16: #{tpu_custom_call.1} parent=11 // pred_fallthru
          _
        // Predicated region
        $region17: #{tpu_custom_call.1} parent=11 // pred_check
          %p314 = pneg %p150
        $region18: #{tpu_custom_call.1} parent=11 // pred_check_branch
          %316 = sbr.rel (%p314) target = $region20
        $region19: #{tpu_custom_call.1} parent=11 // pred_region
          %s318 = ssub.s32 16, 16
          %319 = vsyncadd [#allocation9], %s318
          %s321 = sshll.u32 [#allocation8], 4
          %s322 = int_to_ptr.vmem [resolvable:$true] %s321
          %324 = dma.hbm_to_vmem [thread:$0]  %s4, 16, %s322, [#allocation9]
        $region20: #{tpu_custom_call.1} parent=11 // pred_fallthru
          _
        // Predicated region
        $region21: #{tpu_custom_call.1} parent=11 // pred_check
          %p325 = pneg %p171
        $region22: #{tpu_custom_call.1} parent=11 // pred_check_branch
          %327 = sbr.rel (%p325) target = $region24
        $region23: #{tpu_custom_call.1} parent=11 // pred_region
          _
        $region24: #{tpu_custom_call.1} parent=11 // pred_fallthru
          _
        // Predicated region
        $region25: #{tpu_custom_call.1} parent=11 // pred_check
          %p328 = pneg %p192
        $region26: #{tpu_custom_call.1} parent=11 // pred_check_branch
          %330 = sbr.rel (%p328) target = $region28
        $region27: #{tpu_custom_call.1} parent=11 // pred_region
          _
        $region28: #{tpu_custom_call.1} parent=11 // pred_fallthru
          _
        // Predicated region
        $region29: #{tpu_custom_call.1} parent=11 // pred_check
          %p331 = pneg %p213
        $region30: #{tpu_custom_call.1} parent=11 // pred_check_branch
          %333 = sbr.rel (%p331) target = $region32
        $region31: #{tpu_custom_call.1} parent=11 // pred_region
          %s335 = ssub.s32 256, 256
          %336 = vsyncadd [#allocation9], %s335
          %s337 = sshll.u32 [#allocation10], 4
          %s338 = int_to_ptr.vmem [resolvable:$true] %s337
          %343 = dma.hbm_to_vmem [thread:$0]  %s7, 256, %s338, [#allocation9], 64, 64, 4
        $region32: #{tpu_custom_call.1} parent=11 // pred_fallthru
          _
        // Predicated region
        $region33: #{tpu_custom_call.1} parent=11 // pred_check
          %p344 = pneg %p234
        $region34: #{tpu_custom_call.1} parent=11 // pred_check_branch
          %346 = sbr.rel (%p344) target = $region36
        $region35: #{tpu_custom_call.1} parent=11 // pred_region
          _
        $region36: #{tpu_custom_call.1} parent=11 // pred_fallthru
          _
      $region12: #{tpu_custom_call.1} parent=5 // pred_fallthru
        _
      %p347 = scmp.lt.s32.totalorder %s30, 2
      // Predicated region
      $region37: #{tpu_custom_call.1} parent=5 // pred_check
        %p348 = pneg %p347
      $region38: #{tpu_custom_call.1} parent=5 // pred_check_branch
        %350 = sbr.rel (%p348) target = $region40
      $region39: #{tpu_custom_call.1} parent=5 // pred_region
        // Predicated region
        $region41: #{tpu_custom_call.1} parent=39 // pred_check
          %p351 = pneg %p50
        $region42: #{tpu_custom_call.1} parent=39 // pred_check_branch
          %353 = sbr.rel (%p351) target = $region44
        $region43: #{tpu_custom_call.1} parent=39 // pred_region
          %s354 = sand.u32 %s40, 1
          %s355 = scalar_lea.sflag [#allocation3], %s354
          %s356 = sand.u32 %s40, 1
          %s357 = smul.addr %s356, 8
          %s358 = scalar_lea.vmem [#allocation2], %s357
          %s360 = ssub.s32 128, 128
          %361 = vsyncadd %s355, %s360
          %s362 = smul.addr %s30, 128
          %s363 = scalar_lea.hbm %s0, %s362
          %s365 = sshll.u32 %s358, 4
          %s366 = int_to_ptr.vmem [resolvable:$true] %s365
          %368 = dma.hbm_to_vmem [thread:$0]  %s363, 128, %s366, %s355
        $region44: #{tpu_custom_call.1} parent=39 // pred_fallthru
          _
        // Predicated region
        $region45: #{tpu_custom_call.1} parent=39 // pred_check
          %p369 = pneg %p76
        $region46: #{tpu_custom_call.1} parent=39 // pred_check_branch
          %371 = sbr.rel (%p369) target = $region48
        $region47: #{tpu_custom_call.1} parent=39 // pred_region
          %s372 = sand.u32 %s30, 1
          %s373 = scalar_lea.sflag [#allocation6], %s372
          %s374 = sand.u32 %s66, 1
          %s375 = smul.addr %s374, 8
          %s376 = scalar_lea.vmem [#allocation5], %s375
          %s378 = ssub.s32 128, 128
          %379 = vsyncadd %s373, %s378
          %s380 = smul.addr %s30, 128
          %s381 = scalar_lea.hbm %s1, %s380
          %s383 = sshll.u32 %s376, 4
          %s384 = int_to_ptr.vmem [resolvable:$true] %s383
          %386 = dma.hbm_to_vmem [thread:$0]  %s381, 128, %s384, %s373
        $region48: #{tpu_custom_call.1} parent=39 // pred_fallthru
          _
        // Predicated region
        $region49: #{tpu_custom_call.1} parent=39 // pred_check
          %p387 = pneg %p102
        $region50: #{tpu_custom_call.1} parent=39 // pred_check_branch
          %389 = sbr.rel (%p387) target = $region52
        $region51: #{tpu_custom_call.1} parent=39 // pred_region
          %p390 = scmp.lt.s32.totalorder %s30, 1
          %s391 = scalar_select %p390, %s30, 1
          %s392 = scalar_lea.vmem %s2, %s391
        $region52: #{tpu_custom_call.1} parent=39 // pred_fallthru
          _
      $region40: #{tpu_custom_call.1} parent=5 // pred_fallthru
        _
      %p393 = scmp.le.s32.totalorder 1, %s30
      %p394 = scmp.lt.s32.totalorder %s30, 3
      %p395 = pnand %p393, %p394
      %p396 = pneg %p395
      // Predicated region
      $region53: #{tpu_custom_call.1} parent=5 // pred_check
        _
      $region54: #{tpu_custom_call.1} parent=5 // pred_check_branch
        %398 = sbr.rel (%p395) target = $region56
      $region55: #{tpu_custom_call.1} parent=5 // pred_region
        %s399 = ssub.s32 %s30, 1
        %s400 = sand.u32 %s43, 1
        %s401 = scalar_lea.sflag [#allocation3], %s400
        %s402 = sand.u32 %s43, 1
        %s403 = smul.addr %s402, 8
        %s404 = scalar_lea.vmem [#allocation2], %s403
        // Predicated region
        $region57: #{tpu_custom_call.1} parent=55 // pred_check
          %p405 = pneg %p56
        $region58: #{tpu_custom_call.1} parent=55 // pred_check_branch
          %407 = sbr.rel (%p405) target = $region60
        $region59: #{tpu_custom_call.1} parent=55 // pred_region
          %408 = dma.done %s401, 128
        $region60: #{tpu_custom_call.1} parent=55 // pred_fallthru
          _
        %s409 = sand.u32 %s35, 1
        %s410 = scalar_lea.sflag [#allocation6], %s409
        %s411 = sand.u32 %s69, 1
        %s412 = smul.addr %s411, 8
        %s413 = scalar_lea.vmem [#allocation5], %s412
        // Predicated region
        $region61: #{tpu_custom_call.1} parent=55 // pred_check
          %p414 = pneg %p82
        $region62: #{tpu_custom_call.1} parent=55 // pred_check_branch
          %416 = sbr.rel (%p414) target = $region64
        $region63: #{tpu_custom_call.1} parent=55 // pred_region
          %417 = dma.done %s410, 128
        $region64: #{tpu_custom_call.1} parent=55 // pred_fallthru
          _
        // Predicated region
        $region65: #{tpu_custom_call.1} parent=55 // pred_check
          %p418 = pneg %p129
        $region66: #{tpu_custom_call.1} parent=55 // pred_check_branch
          %420 = sbr.rel (%p418) target = $region68
        $region67: #{tpu_custom_call.1} parent=55 // pred_region
          %421 = dma.done [#allocation6], 256
        $region68: #{tpu_custom_call.1} parent=55 // pred_fallthru
          _
        // Predicated region
        $region69: #{tpu_custom_call.1} parent=55 // pred_check
          %p422 = pneg %p150
        $region70: #{tpu_custom_call.1} parent=55 // pred_check_branch
          %424 = sbr.rel (%p422) target = $region72
        $region71: #{tpu_custom_call.1} parent=55 // pred_region
          %425 = dma.done [#allocation9], 16
        $region72: #{tpu_custom_call.1} parent=55 // pred_fallthru
          _
        // Predicated region
        $region73: #{tpu_custom_call.1} parent=55 // pred_check
          %p426 = pneg %p213
        $region74: #{tpu_custom_call.1} parent=55 // pred_check_branch
          %428 = sbr.rel (%p426) target = $region76
        $region75: #{tpu_custom_call.1} parent=55 // pred_region
          %429 = dma.done [#allocation9], 256
        $region76: #{tpu_custom_call.1} parent=55 // pred_fallthru
          _
        %s430 = sand.u32 %s43, 1
        %s431 = scalar_lea.sflag [#allocation3], %s430
        %s432 = sand.u32 %s43, 1
        %s433 = smul.addr %s432, 8
        %s434 = scalar_lea.vmem [#allocation2], %s433
        %p435 = pneg %p56
        %p436 = pneg %p53
        %s437 = sand.u32 %s35, 1
        %s438 = scalar_lea.sflag [#allocation6], %s437
        %s439 = sand.u32 %s69, 1
        %s440 = smul.addr %s439, 8
        %s441 = scalar_lea.vmem [#allocation5], %s440
        %p442 = pneg %p82
        %p443 = pneg %p79
        %p444 = scmp.lt.s32.totalorder %s35, 1
        %s445 = scalar_select %p444, %s35, 1
        %s446 = scalar_lea.vmem %s2, %s445
        %p447 = pneg %p108
        %p448 = pneg %p105
        %p449 = pneg %p129
        %p450 = pneg %p126
        %p451 = pneg %p150
        %p452 = pneg %p147
        %p453 = pneg %p171
        %p454 = pneg %p168
        %p455 = pneg %p192
        %p456 = pneg %p189
        %p457 = pneg %p213
        %p458 = pneg %p210
        %p459 = pneg %p234
        %p460 = pneg %p231
        %p461 = pneg %p260
        %p462 = pneg %p257
        %s463 = sand.u32 %s247, 1
        %s464 = scalar_lea.sflag [#allocation4], %s463
        %s465 = sand.u32 %s247, 1
        %s466 = smul.addr %s465, 8
        %s467 = scalar_lea.vmem [#allocation11], %s466
        %p468 = pneg %p286
        %p469 = pneg %p283
        %s470 = sand.u32 %s273, 1
        %s471 = scalar_lea.sflag [#allocation13], %s470
        %s472 = sand.u32 %s273, 1
        %s473 = smul.addr %s472, 32
        %s474 = scalar_lea.vmem [#allocation12], %s473
        %p475 = scmp.lt.s32.totalorder %s35, 1
        %s476 = scalar_select %p475, %s35, 1
        %s477 = scalar_lea.vmem %s2, %s476
        %v479 = vld [vmem:[%s404] sm:$0xff]
        %v480 = vpack.c.bf16 %v479, %v479
        %v481 = vld [vmem:[%s413] sm:$0xff]
        %v482 = vpack.c.bf16 %v481, %v481
        %v483 = vld [vmem:[#allocation7] sm:$0xf]
        %v484 = vld [vmem:[#allocation7 + $0x4] sm:$0xf]
        %v485 = vld [vmem:[#allocation7 + $0x8] sm:$0xf]
        %v486 = vld [vmem:[#allocation7 + $0xc] sm:$0xf]
        %v487 = vld [vmem:[#allocation8] sm:$0x1]
        %v489 = vlaneseq
        %v490 = vshrl.u32 %v489, 7
        %v491 = vsub.s32 0, %v490
        %v492 = vrot.slane %v487, %v491
        %v498 = vunpack.c.l.b16 %v483
        %v499 = vunpack.c.l.b16 %v484
        %v500 = vunpack.c.l.b16 %v485
        %v501 = vunpack.c.l.b16 %v486
        %v502 = vpack.c.b16 %v499, %v498
        %v503 = vpack.c.b16 %v501, %v500
        %vm506 = vcmask 261120
        %v508 = vsel %vm506, %v480, 0
        %510 = vmatprep.subr.bf16.mxu0 0
        %511 = vmatpush1.bf16.msra.mxu0 %v502
        %512 = vmatprep.subr.bf16.mxu0 0
        %513 = vmatpush1.bf16.msra.mxu0 %v503
        %514 = vmatprep.subr.bf16.mxu0 0
        %515 = vmatpush1.bf16.msra.mxu0 0
        %516 = vmatprep.subr.bf16.mxu0 0
        %517 = vmatpush1.bf16.msra.mxu0 0
        %518 = vmatprep.subr.bf16.mxu0 0
        %519 = vmatpush1.bf16.msra.mxu0 0
        %520 = vmatprep.subr.bf16.mxu0 0
        %521 = vmatpush1.bf16.msra.mxu0 0
        %522 = vmatprep.subr.bf16.mxu0 0
        %523 = vmatpush1.bf16.msra.mxu0 0
        %524 = vmatprep.subr.bf16.mxu0 0
        %525 = vmatpush1.bf16.msra.mxu0 0
        %526 = vmatprep.subr.bf16.mxu0 0
        %527 = vmatpush1.bf16.msra.mxu0 0
        %528 = vmatprep.subr.bf16.mxu0 0
        %529 = vmatpush1.bf16.msra.mxu0 0
        %530 = vmatprep.subr.bf16.mxu0 0
        %531 = vmatpush1.bf16.msra.mxu0 0
        %532 = vmatprep.subr.bf16.mxu0 0
        %533 = vmatpush1.bf16.msra.mxu0 0
        %534 = vmatprep.subr.bf16.mxu0 0
        %535 = vmatpush1.bf16.msra.mxu0 0
        %536 = vmatprep.subr.bf16.mxu0 0
        %537 = vmatpush1.bf16.msra.mxu0 0
        %538 = vmatprep.subr.bf16.mxu0 0
        %539 = vmatpush1.bf16.msra.mxu0 0
        %540 = vmatprep.subr.bf16.mxu0 0
        %541 = vmatpush1.bf16.msra.mxu0 0
        %542 = vmatprep.mubr.bf16.mxu0 0
        %543 = vmatmul.mubr.bf16.gmra.mrb[0].mxu0 %v508
        %v544 = vpop.f32.mrb[0].mxu0
        %v545 = vadd.f32 %v492, %v544
        %v546 = vpop.f32.mrb[0].mxu0
        %v547 = vpop.f32.mrb[0].mxu0
        %v548 = vpop.f32.mrb[0].mxu0
        %549 = vdwg.mxu0
        %v550 = vld [vmem:[%s5] sm:$0xf]
        %v551 = vld [vmem:[%s5 + $0x4] sm:$0xf]
        %v552 = vld [vmem:[%s5 + $0x8] sm:$0xf]
        %v553 = vld [vmem:[%s5 + $0xc] sm:$0xf]
        %v554 = vld [vmem:[%s6] sm:$0x1]
        %v556 = vlaneseq
        %v557 = vshrl.u32 %v556, 7
        %v558 = vsub.s32 0, %v557
        %v559 = vrot.slane %v554, %v558
        %v565 = vunpack.c.l.b16 %v550
        %v566 = vunpack.c.l.b16 %v551
        %v567 = vunpack.c.l.b16 %v552
        %v568 = vunpack.c.l.b16 %v553
        %v569 = vpack.c.b16 %v566, %v565
        %v570 = vpack.c.b16 %v568, %v567
        %v574 = vsel %vm506, %v482, 0
        %576 = vmatprep.subr.bf16.mxu0 0
        %577 = vmatpush1.bf16.msra.mxu0 %v569
        %578 = vmatprep.subr.bf16.mxu0 0
        %579 = vmatpush1.bf16.msra.mxu0 %v570
        %580 = vmatprep.subr.bf16.mxu0 0
        %581 = vmatpush1.bf16.msra.mxu0 0
        %582 = vmatprep.subr.bf16.mxu0 0
        %583 = vmatpush1.bf16.msra.mxu0 0
        %584 = vmatprep.subr.bf16.mxu0 0
        %585 = vmatpush1.bf16.msra.mxu0 0
        %586 = vmatprep.subr.bf16.mxu0 0
        %587 = vmatpush1.bf16.msra.mxu0 0
        %588 = vmatprep.subr.bf16.mxu0 0
        %589 = vmatpush1.bf16.msra.mxu0 0
        %590 = vmatprep.subr.bf16.mxu0 0
        %591 = vmatpush1.bf16.msra.mxu0 0
        %592 = vmatprep.subr.bf16.mxu0 0
        %593 = vmatpush1.bf16.msra.mxu0 0
        %594 = vmatprep.subr.bf16.mxu0 0
        %595 = vmatpush1.bf16.msra.mxu0 0
        %596 = vmatprep.subr.bf16.mxu0 0
        %597 = vmatpush1.bf16.msra.mxu0 0
        %598 = vmatprep.subr.bf16.mxu0 0
        %599 = vmatpush1.bf16.msra.mxu0 0
        %600 = vmatprep.subr.bf16.mxu0 0
        %601 = vmatpush1.bf16.msra.mxu0 0
        %602 = vmatprep.subr.bf16.mxu0 0
        %603 = vmatpush1.bf16.msra.mxu0 0
        %604 = vmatprep.subr.bf16.mxu0 0
        %605 = vmatpush1.bf16.msra.mxu0 0
        %606 = vmatprep.subr.bf16.mxu0 0
        %607 = vmatpush1.bf16.msra.mxu0 0
        %608 = vmatprep.mubr.bf16.mxu0 0
        %609 = vmatmul.mubr.bf16.gmra.mrb[0].mxu0 %v574
        %v610 = vpop.f32.mrb[0].mxu0
        %v611 = vadd.f32 %v559, %v610
        %v612 = vpop.f32.mrb[0].mxu0
        %v613 = vpop.f32.mrb[0].mxu0
        %v614 = vpop.f32.mrb[0].mxu0
        %615 = vdwg.mxu0
        %v616 = vld [vmem:[%s477] sm:$0x1]
        %vm617 = vcmp.gt.f32.partialorder %v616, 0.0
        %v618 = vpack.c.bf16 %v545, %v545
        %v619 = vpack.c.bf16 %v611, %v611
        %621 = vrot.lane.b32.xlu0 %v619, 96
        %v622 = vpop.permute.xlu0 %621
        %vm623 = vcmask 64512
        %v625 = vsel %vm623, %v619, 0
        %v628 = vsel %vm623, %v622, 0
        %630 = vmatprep.subr.bf16.mxu0 0
        %631 = vmatpush1.bf16.xpose.msra.mxu0 %v628
        %632 = vmatprep.subr.bf16.mxu0 0
        %633 = vmatpush1.bf16.xpose.msra.mxu0 0
        %634 = vmatprep.subr.bf16.mxu0 0
        %635 = vmatpush1.bf16.xpose.msra.mxu0 0
        %636 = vmatprep.subr.bf16.mxu0 0
        %637 = vmatpush1.bf16.xpose.msra.mxu0 0
        %638 = vmatprep.subr.bf16.mxu0 0
        %639 = vmatpush1.bf16.xpose.msra.mxu0 0
        %640 = vmatprep.subr.bf16.mxu0 0
        %641 = vmatpush1.bf16.xpose.msra.mxu0 0
        %642 = vmatprep.subr.bf16.mxu0 0
        %643 = vmatpush1.bf16.xpose.msra.mxu0 0
        %644 = vmatprep.subr.bf16.mxu0 0
        %645 = vmatpush1.bf16.xpose.msra.mxu0 0
        %646 = vmatprep.subr.bf16.mxu0 0
        %647 = vmatpush1.bf16.xpose.msra.mxu0 0
        %648 = vmatprep.subr.bf16.mxu0 0
        %649 = vmatpush1.bf16.xpose.msra.mxu0 0
        %650 = vmatprep.subr.bf16.mxu0 0
        %651 = vmatpush1.bf16.xpose.msra.mxu0 0
        %652 = vmatprep.subr.bf16.mxu0 0
        %653 = vmatpush1.bf16.xpose.msra.mxu0 0
        %654 = vmatprep.subr.bf16.mxu0 0
        %655 = vmatpush1.bf16.xpose.msra.mxu0 0
        %656 = vmatprep.subr.bf16.mxu0 0
        %657 = vmatpush1.bf16.xpose.msra.mxu0 0
        %658 = vmatprep.subr.bf16.mxu0 0
        %659 = vmatpush1.bf16.xpose.msra.mxu0 0
        %660 = vmatprep.subr.bf16.mxu0 0
        %661 = vmatpush1.bf16.xpose.msra.mxu0 0
        %662 = vmatprep.mubr.bf16.mxu0 0
        %663 = vmatmul.mubr.bf16.gmra.mrb[0].mxu0 %v625
        %v664 = vpop.f32.mrb[0].mxu0
        %v665 = vadd.f32 0.0, %v664
        %v666 = vpop.f32.mrb[0].mxu0
        %v667 = vpop.f32.mrb[0].mxu0
        %v668 = vpop.f32.mrb[0].mxu0
        %669 = vdwg.mxu0
        %670 = vst.msk [vmem:[%s474] sm:$0xff] %vm623, %v665
        %672 = vrot.lane.b32.xlu0 %v618, 96
        %v673 = vpop.permute.xlu0 %672
        %v675 = vsel %vm623, %v618, 0
        %v678 = vsel %vm623, %v673, 0
        %680 = vmatprep.subr.bf16.mxu0 0
        %681 = vmatpush1.bf16.xpose.msra.mxu0 %v678
        %682 = vmatprep.subr.bf16.mxu0 0
        %683 = vmatpush1.bf16.xpose.msra.mxu0 0
        %684 = vmatprep.subr.bf16.mxu0 0
        %685 = vmatpush1.bf16.xpose.msra.mxu0 0
        %686 = vmatprep.subr.bf16.mxu0 0
        %687 = vmatpush1.bf16.xpose.msra.mxu0 0
        %688 = vmatprep.subr.bf16.mxu0 0
        %689 = vmatpush1.bf16.xpose.msra.mxu0 0
        %690 = vmatprep.subr.bf16.mxu0 0
        %691 = vmatpush1.bf16.xpose.msra.mxu0 0
        %692 = vmatprep.subr.bf16.mxu0 0
        %693 = vmatpush1.bf16.xpose.msra.mxu0 0
        %694 = vmatprep.subr.bf16.mxu0 0
        %695 = vmatpush1.bf16.xpose.msra.mxu0 0
        %696 = vmatprep.subr.bf16.mxu0 0
        %697 = vmatpush1.bf16.xpose.msra.mxu0 0
        %698 = vmatprep.subr.bf16.mxu0 0
        %699 = vmatpush1.bf16.xpose.msra.mxu0 0
        %700 = vmatprep.subr.bf16.mxu0 0
        %701 = vmatpush1.bf16.xpose.msra.mxu0 0
        %702 = vmatprep.subr.bf16.mxu0 0
        %703 = vmatpush1.bf16.xpose.msra.mxu0 0
        %704 = vmatprep.subr.bf16.mxu0 0
        %705 = vmatpush1.bf16.xpose.msra.mxu0 0
        %706 = vmatprep.subr.bf16.mxu0 0
        %707 = vmatpush1.bf16.xpose.msra.mxu0 0
        %708 = vmatprep.subr.bf16.mxu0 0
        %709 = vmatpush1.bf16.xpose.msra.mxu0 0
        %710 = vmatprep.subr.bf16.mxu0 0
        %711 = vmatpush1.bf16.xpose.msra.mxu0 0
        %712 = vmatprep.mubr.bf16.mxu0 0
        %713 = vmatmul.mubr.bf16.gmra.mrb[0].mxu0 %v675
        %v714 = vpop.f32.mrb[0].mxu0
        %v715 = vadd.f32 %v665, %v714
        %v716 = vpop.f32.mrb[0].mxu0
        %v717 = vpop.f32.mrb[0].mxu0
        %v718 = vpop.f32.mrb[0].mxu0
        %719 = vdwg.mxu0
        %v720 = vsel %vm617, 1, 0
        %v721 = vlaneseq
        %v722 = vshrl.u32 %v721, 7
        %v723 = vsub.s32 0, %v722
        %v724 = vrot.slane %v720, %v723
        %vm725 = vcmp.eq.s32.totalorder %v724, 1
        %v726 = vsel %vm725, -1e+09, %v715
        %v727 = vsel %vm623, %v726, -inf
        %728 = vmax.xlane.f32.xlu0 %v727
        %v729 = vpop.xlane.xlu0 %728
        %v730 = vsub.f32 %v726, %v729
        %v731 = vmul.f32 %v730, 1.442695
        %v732 = vpow.pop %v731
        %v733 = vsel %vm623, %v732, 0.0
        %734 = vadd.xlane.f32.xlu0 %v733
        %v735 = vpop.xlane.xlu0 %734
        %v736 = vrcp.pop %v735
        %v737 = vmul.f32 %v732, %v736
        %v738 = vpack.c.bf16 %v737, %v737
        %739 = vrot.lane.b32.xlu0 %v618, 64
        %v740 = vpop.permute.xlu0 %739
        %v742 = vsel %vm623, %v738, 0
        %vm744 = vcmask 1043456
        %v746 = vsel %vm744, %v740, 0
        %748 = vmatprep.subr.bf16.mxu0 0
        %749 = vmatpush1.bf16.msra.mxu0 %v746
        %750 = vmatprep.subr.bf16.mxu0 0
        %751 = vmatpush1.bf16.msra.mxu0 0
        %752 = vmatprep.subr.bf16.mxu0 0
        %753 = vmatpush1.bf16.msra.mxu0 0
        %754 = vmatprep.subr.bf16.mxu0 0
        %755 = vmatpush1.bf16.msra.mxu0 0
        %756 = vmatprep.subr.bf16.mxu0 0
        %757 = vmatpush1.bf16.msra.mxu0 0
        %758 = vmatprep.subr.bf16.mxu0 0
        %759 = vmatpush1.bf16.msra.mxu0 0
        %760 = vmatprep.subr.bf16.mxu0 0
        %761 = vmatpush1.bf16.msra.mxu0 0
        %762 = vmatprep.subr.bf16.mxu0 0
        %763 = vmatpush1.bf16.msra.mxu0 0
        %764 = vmatprep.subr.bf16.mxu0 0
        %765 = vmatpush1.bf16.msra.mxu0 0
        %766 = vmatprep.subr.bf16.mxu0 0
        %767 = vmatpush1.bf16.msra.mxu0 0
        %768 = vmatprep.subr.bf16.mxu0 0
        %769 = vmatpush1.bf16.msra.mxu0 0
        %770 = vmatprep.subr.bf16.mxu0 0
        %771 = vmatpush1.bf16.msra.mxu0 0
        %772 = vmatprep.subr.bf16.mxu0 0
        %773 = vmatpush1.bf16.msra.mxu0 0
        %774 = vmatprep.subr.bf16.mxu0 0
        %775 = vmatpush1.bf16.msra.mxu0 0
        %776 = vmatprep.subr.bf16.mxu0 0
        %777 = vmatpush1.bf16.msra.mxu0 0
        %778 = vmatprep.subr.bf16.mxu0 0
        %779 = vmatpush1.bf16.msra.mxu0 0
        %780 = vmatprep.mubr.bf16.mxu0 0
        %781 = vmatmul.mubr.bf16.gmra.mrb[0].mxu0 %v742
        %v782 = vpop.f32.mrb[0].mxu0
        %v783 = vadd.f32 0.0, %v782
        %v784 = vpop.f32.mrb[0].mxu0
        %v785 = vpop.f32.mrb[0].mxu0
        %v786 = vpop.f32.mrb[0].mxu0
        %787 = vdwg.mxu0
        %v788 = vpack.c.bf16 %v783, %v783
        %v789 = vld [vmem:[#allocation10] sm:$0xf]
        %790 = vrot.lane.b32.xlu0 %v619, 120
        %v791 = vpop.permute.xlu0 %790
        %792 = vrot.lane.b32.xlu0 %v619, 88
        %v793 = vpop.permute.xlu0 %792
        %v795 = vsel %vm623, %v791, 0
        %v798 = vsel %vm623, %v793, 0
        %800 = vmatprep.subr.bf16.mxu0 0
        %801 = vmatpush1.bf16.xpose.msra.mxu0 %v798
        %802 = vmatprep.subr.bf16.mxu0 0
        %803 = vmatpush1.bf16.xpose.msra.mxu0 0
        %804 = vmatprep.subr.bf16.mxu0 0
        %805 = vmatpush1.bf16.xpose.msra.mxu0 0
        %806 = vmatprep.subr.bf16.mxu0 0
        %807 = vmatpush1.bf16.xpose.msra.mxu0 0
        %808 = vmatprep.subr.bf16.mxu0 0
        %809 = vmatpush1.bf16.xpose.msra.mxu0 0
        %810 = vmatprep.subr.bf16.mxu0 0
        %811 = vmatpush1.bf16.xpose.msra.mxu0 0
        %812 = vmatprep.subr.bf16.mxu0 0
        %813 = vmatpush1.bf16.xpose.msra.mxu0 0
        %814 = vmatprep.subr.bf16.mxu0 0
        %815 = vmatpush1.bf16.xpose.msra.mxu0 0
        %816 = vmatprep.subr.bf16.mxu0 0
        %817 = vmatpush1.bf16.xpose.msra.mxu0 0
        %818 = vmatprep.subr.bf16.mxu0 0
        %819 = vmatpush1.bf16.xpose.msra.mxu0 0
        %820 = vmatprep.subr.bf16.mxu0 0
        %821 = vmatpush1.bf16.xpose.msra.mxu0 0
        %822 = vmatprep.subr.bf16.mxu0 0
        %823 = vmatpush1.bf16.xpose.msra.mxu0 0
        %824 = vmatprep.subr.bf16.mxu0 0
        %825 = vmatpush1.bf16.xpose.msra.mxu0 0
        %826 = vmatprep.subr.bf16.mxu0 0
        %827 = vmatpush1.bf16.xpose.msra.mxu0 0
        %828 = vmatprep.subr.bf16.mxu0 0
        %829 = vmatpush1.bf16.xpose.msra.mxu0 0
        %830 = vmatprep.subr.bf16.mxu0 0
        %831 = vmatpush1.bf16.xpose.msra.mxu0 0
        %832 = vmatprep.mubr.bf16.mxu0 0
        %833 = vmatmul.mubr.bf16.gmra.mrb[0].mxu0 %v795
        %v834 = vpop.f32.mrb[0].mxu0
        %v835 = vadd.f32 0.0, %v834
        %v836 = vpop.f32.mrb[0].mxu0
        %v837 = vpop.f32.mrb[0].mxu0
        %v838 = vpop.f32.mrb[0].mxu0
        %839 = vdwg.mxu0
        %s840 = scalar_lea.vmem %s474, 8 [#allocation12]
        %841 = vst.msk [vmem:[%s840] sm:$0xff] %vm623, %v835
        %842 = vrot.lane.b32.xlu0 %v618, 120
        %v843 = vpop.permute.xlu0 %842
        %844 = vrot.lane.b32.xlu0 %v618, 88
        %v845 = vpop.permute.xlu0 %844
        %v847 = vsel %vm623, %v843, 0
        %v850 = vsel %vm623, %v845, 0
        %852 = vmatprep.subr.bf16.mxu0 0
        %853 = vmatpush1.bf16.xpose.msra.mxu0 %v850
        %854 = vmatprep.subr.bf16.mxu0 0
        %855 = vmatpush1.bf16.xpose.msra.mxu0 0
        %856 = vmatprep.subr.bf16.mxu0 0
        %857 = vmatpush1.bf16.xpose.msra.mxu0 0
        %858 = vmatprep.subr.bf16.mxu0 0
        %859 = vmatpush1.bf16.xpose.msra.mxu0 0
        %860 = vmatprep.subr.bf16.mxu0 0
        %861 = vmatpush1.bf16.xpose.msra.mxu0 0
        %862 = vmatprep.subr.bf16.mxu0 0
        %863 = vmatpush1.bf16.xpose.msra.mxu0 0
        %864 = vmatprep.subr.bf16.mxu0 0
        %865 = vmatpush1.bf16.xpose.msra.mxu0 0
        %866 = vmatprep.subr.bf16.mxu0 0
        %867 = vmatpush1.bf16.xpose.msra.mxu0 0
        %868 = vmatprep.subr.bf16.mxu0 0
        %869 = vmatpush1.bf16.xpose.msra.mxu0 0
        %870 = vmatprep.subr.bf16.mxu0 0
        %871 = vmatpush1.bf16.xpose.msra.mxu0 0
        %872 = vmatprep.subr.bf16.mxu0 0
        %873 = vmatpush1.bf16.xpose.msra.mxu0 0
        %874 = vmatprep.subr.bf16.mxu0 0
        %875 = vmatpush1.bf16.xpose.msra.mxu0 0
        %876 = vmatprep.subr.bf16.mxu0 0
        %877 = vmatpush1.bf16.xpose.msra.mxu0 0
        %878 = vmatprep.subr.bf16.mxu0 0
        %879 = vmatpush1.bf16.xpose.msra.mxu0 0
        %880 = vmatprep.subr.bf16.mxu0 0
        %881 = vmatpush1.bf16.xpose.msra.mxu0 0
        %882 = vmatprep.subr.bf16.mxu0 0
        %883 = vmatpush1.bf16.xpose.msra.mxu0 0
        %884 = vmatprep.mubr.bf16.mxu0 0
        %885 = vmatmul.mubr.bf16.gmra.mrb[0].mxu0 %v847
        %v886 = vpop.f32.mrb[0].mxu0
        %v887 = vadd.f32 %v835, %v886
        %v888 = vpop.f32.mrb[0].mxu0
        %v889 = vpop.f32.mrb[0].mxu0
        %v890 = vpop.f32.mrb[0].mxu0
        %891 = vdwg.mxu0
        %v892 = vsel %vm725, -1e+09, %v887
        %v893 = vsel %vm623, %v892, -inf
        %894 = vmax.xlane.f32.xlu0 %v893
        %v895 = vpop.xlane.xlu0 %894
        %v896 = vsub.f32 %v892, %v895
        %v897 = vmul.f32 %v896, 1.442695
        %v898 = vpow.pop %v897
        %v899 = vsel %vm623, %v898, 0.0
        %900 = vadd.xlane.f32.xlu0 %v899
        %v901 = vpop.xlane.xlu0 %900
        %v902 = vrcp.pop %v901
        %v903 = vmul.f32 %v898, %v902
        %v904 = vpack.c.bf16 %v903, %v903
        %905 = vrot.lane.b32.xlu0 %v618, 56
        %v906 = vpop.permute.xlu0 %905
        %v908 = vsel %vm623, %v904, 0
        %v911 = vsel %vm744, %v906, 0
        %913 = vmatprep.subr.bf16.mxu0 0
        %914 = vmatpush1.bf16.msra.mxu0 %v911
        %915 = vmatprep.subr.bf16.mxu0 0
        %916 = vmatpush1.bf16.msra.mxu0 0
        %917 = vmatprep.subr.bf16.mxu0 0
        %918 = vmatpush1.bf16.msra.mxu0 0
        %919 = vmatprep.subr.bf16.mxu0 0
        %920 = vmatpush1.bf16.msra.mxu0 0
        %921 = vmatprep.subr.bf16.mxu0 0
        %922 = vmatpush1.bf16.msra.mxu0 0
        %923 = vmatprep.subr.bf16.mxu0 0
        %924 = vmatpush1.bf16.msra.mxu0 0
        %925 = vmatprep.subr.bf16.mxu0 0
        %926 = vmatpush1.bf16.msra.mxu0 0
        %927 = vmatprep.subr.bf16.mxu0 0
        %928 = vmatpush1.bf16.msra.mxu0 0
        %929 = vmatprep.subr.bf16.mxu0 0
        %930 = vmatpush1.bf16.msra.mxu0 0
        %931 = vmatprep.subr.bf16.mxu0 0
        %932 = vmatpush1.bf16.msra.mxu0 0
        %933 = vmatprep.subr.bf16.mxu0 0
        %934 = vmatpush1.bf16.msra.mxu0 0
        %935 = vmatprep.subr.bf16.mxu0 0
        %936 = vmatpush1.bf16.msra.mxu0 0
        %937 = vmatprep.subr.bf16.mxu0 0
        %938 = vmatpush1.bf16.msra.mxu0 0
        %939 = vmatprep.subr.bf16.mxu0 0
        %940 = vmatpush1.bf16.msra.mxu0 0
        %941 = vmatprep.subr.bf16.mxu0 0
        %942 = vmatpush1.bf16.msra.mxu0 0
        %943 = vmatprep.subr.bf16.mxu0 0
        %944 = vmatpush1.bf16.msra.mxu0 0
        %945 = vmatprep.mubr.bf16.mxu0 0
        %946 = vmatmul.mubr.bf16.gmra.mrb[0].mxu0 %v908
        %v947 = vpop.f32.mrb[0].mxu0
        %v948 = vadd.f32 0.0, %v947
        %v949 = vpop.f32.mrb[0].mxu0
        %v950 = vpop.f32.mrb[0].mxu0
        %v951 = vpop.f32.mrb[0].mxu0
        %952 = vdwg.mxu0
        %v953 = vpack.c.bf16 %v948, %v948
        %v954 = vld [vmem:[#allocation10 + $0x4] sm:$0xf]
        %v956 = vsel %vm623, %v953, 0
        %v959 = vsel %vm744, %v954, 0
        %961 = vmatprep.subr.bf16.mxu0 0
        %962 = vmatpush1.bf16.msra.mxu0 %v959
        %963 = vmatprep.subr.bf16.mxu0 0
        %964 = vmatpush1.bf16.msra.mxu0 0
        %965 = vmatprep.subr.bf16.mxu0 0
        %966 = vmatpush1.bf16.msra.mxu0 0
        %967 = vmatprep.subr.bf16.mxu0 0
        %968 = vmatpush1.bf16.msra.mxu0 0
        %969 = vmatprep.subr.bf16.mxu0 0
        %970 = vmatpush1.bf16.msra.mxu0 0
        %971 = vmatprep.subr.bf16.mxu0 0
        %972 = vmatpush1.bf16.msra.mxu0 0
        %973 = vmatprep.subr.bf16.mxu0 0
        %974 = vmatpush1.bf16.msra.mxu0 0
        %975 = vmatprep.subr.bf16.mxu0 0
        %976 = vmatpush1.bf16.msra.mxu0 0
        %977 = vmatprep.subr.bf16.mxu0 0
        %978 = vmatpush1.bf16.msra.mxu0 0
        %979 = vmatprep.subr.bf16.mxu0 0
        %980 = vmatpush1.bf16.msra.mxu0 0
        %981 = vmatprep.subr.bf16.mxu0 0
        %982 = vmatpush1.bf16.msra.mxu0 0
        %983 = vmatprep.subr.bf16.mxu0 0
        %984 = vmatpush1.bf16.msra.mxu0 0
        %985 = vmatprep.subr.bf16.mxu0 0
        %986 = vmatpush1.bf16.msra.mxu0 0
        %987 = vmatprep.subr.bf16.mxu0 0
        %988 = vmatpush1.bf16.msra.mxu0 0
        %989 = vmatprep.subr.bf16.mxu0 0
        %990 = vmatpush1.bf16.msra.mxu0 0
        %991 = vmatprep.subr.bf16.mxu0 0
        %992 = vmatpush1.bf16.msra.mxu0 0
        %993 = vmatprep.mubr.bf16.mxu0 0
        %994 = vmatmul.mubr.bf16.gmra.mrb[0].mxu0 %v956
        %v995 = vpop.f32.mrb[0].mxu0
        %v996 = vadd.f32 0.0, %v995
        %v997 = vpop.f32.mrb[0].mxu0
        %v998 = vpop.f32.mrb[0].mxu0
        %v999 = vpop.f32.mrb[0].mxu0
        %1000 = vdwg.mxu0
        %v1002 = vsel %vm623, %v788, 0
        %v1005 = vsel %vm744, %v789, 0
        %1007 = vmatprep.subr.bf16.mxu0 0
        %1008 = vmatpush1.bf16.msra.mxu0 %v1005
        %1009 = vmatprep.subr.bf16.mxu0 0
        %1010 = vmatpush1.bf16.msra.mxu0 0
        %1011 = vmatprep.subr.bf16.mxu0 0
        %1012 = vmatpush1.bf16.msra.mxu0 0
        %1013 = vmatprep.subr.bf16.mxu0 0
        %1014 = vmatpush1.bf16.msra.mxu0 0
        %1015 = vmatprep.subr.bf16.mxu0 0
        %1016 = vmatpush1.bf16.msra.mxu0 0
        %1017 = vmatprep.subr.bf16.mxu0 0
        %1018 = vmatpush1.bf16.msra.mxu0 0
        %1019 = vmatprep.subr.bf16.mxu0 0
        %1020 = vmatpush1.bf16.msra.mxu0 0
        %1021 = vmatprep.subr.bf16.mxu0 0
        %1022 = vmatpush1.bf16.msra.mxu0 0
        %1023 = vmatprep.subr.bf16.mxu0 0
        %1024 = vmatpush1.bf16.msra.mxu0 0
        %1025 = vmatprep.subr.bf16.mxu0 0
        %1026 = vmatpush1.bf16.msra.mxu0 0
        %1027 = vmatprep.subr.bf16.mxu0 0
        %1028 = vmatpush1.bf16.msra.mxu0 0
        %1029 = vmatprep.subr.bf16.mxu0 0
        %1030 = vmatpush1.bf16.msra.mxu0 0
        %1031 = vmatprep.subr.bf16.mxu0 0
        %1032 = vmatpush1.bf16.msra.mxu0 0
        %1033 = vmatprep.subr.bf16.mxu0 0
        %1034 = vmatpush1.bf16.msra.mxu0 0
        %1035 = vmatprep.subr.bf16.mxu0 0
        %1036 = vmatpush1.bf16.msra.mxu0 0
        %1037 = vmatprep.subr.bf16.mxu0 0
        %1038 = vmatpush1.bf16.msra.mxu0 0
        %1039 = vmatprep.mubr.bf16.mxu0 0
        %1040 = vmatmul.mubr.bf16.gmra.mrb[0].mxu0 %v1002
        %v1041 = vpop.f32.mrb[0].mxu0
        %v1042 = vadd.f32 %v996, %v1041
        %v1043 = vpop.f32.mrb[0].mxu0
        %v1044 = vpop.f32.mrb[0].mxu0
        %v1045 = vpop.f32.mrb[0].mxu0
        %1046 = vdwg.mxu0
        %1047 = vrot.lane.b32.xlu0 %v619, 112
        %v1048 = vpop.permute.xlu0 %1047
        %1049 = vrot.lane.b32.xlu0 %v619, 80
        %v1050 = vpop.permute.xlu0 %1049
        %v1052 = vsel %vm623, %v1048, 0
        %v1055 = vsel %vm623, %v1050, 0
        %1057 = vmatprep.subr.bf16.mxu0 0
        %1058 = vmatpush1.bf16.xpose.msra.mxu0 %v1055
        %1059 = vmatprep.subr.bf16.mxu0 0
        %1060 = vmatpush1.bf16.xpose.msra.mxu0 0
        %1061 = vmatprep.subr.bf16.mxu0 0
        %1062 = vmatpush1.bf16.xpose.msra.mxu0 0
        %1063 = vmatprep.subr.bf16.mxu0 0
        %1064 = vmatpush1.bf16.xpose.msra.mxu0 0
        %1065 = vmatprep.subr.bf16.mxu0 0
        %1066 = vmatpush1.bf16.xpose.msra.mxu0 0
        %1067 = vmatprep.subr.bf16.mxu0 0
        %1068 = vmatpush1.bf16.xpose.msra.mxu0 0
        %1069 = vmatprep.subr.bf16.mxu0 0
        %1070 = vmatpush1.bf16.xpose.msra.mxu0 0
        %1071 = vmatprep.subr.bf16.mxu0 0
        %1072 = vmatpush1.bf16.xpose.msra.mxu0 0
        %1073 = vmatprep.subr.bf16.mxu0 0
        %1074 = vmatpush1.bf16.xpose.msra.mxu0 0
        %1075 = vmatprep.subr.bf16.mxu0 0
        %1076 = vmatpush1.bf16.xpose.msra.mxu0 0
        %1077 = vmatprep.subr.bf16.mxu0 0
        %1078 = vmatpush1.bf16.xpose.msra.mxu0 0
        %1079 = vmatprep.subr.bf16.mxu0 0
        %1080 = vmatpush1.bf16.xpose.msra.mxu0 0
        %1081 = vmatprep.subr.bf16.mxu0 0
        %1082 = vmatpush1.bf16.xpose.msra.mxu0 0
        %1083 = vmatprep.subr.bf16.mxu0 0
        %1084 = vmatpush1.bf16.xpose.msra.mxu0 0
        %1085 = vmatprep.subr.bf16.mxu0 0
        %1086 = vmatpush1.bf16.xpose.msra.mxu0 0
        %1087 = vmatprep.subr.bf16.mxu0 0
        %1088 = vmatpush1.bf16.xpose.msra.mxu0 0
        %1089 = vmatprep.mubr.bf16.mxu0 0
        %1090 = vmatmul.mubr.bf16.gmra.mrb[0].mxu0 %v1052
        %v1091 = vpop.f32.mrb[0].mxu0
        %v1092 = vadd.f32 0.0, %v1091
        %v1093 = vpop.f32.mrb[0].mxu0
        %v1094 = vpop.f32.mrb[0].mxu0
        %v1095 = vpop.f32.mrb[0].mxu0
        %1096 = vdwg.mxu0
        %s1097 = scalar_lea.vmem %s474, 16 [#allocation12]
        %1098 = vst.msk [vmem:[%s1097] sm:$0xff] %vm623, %v1092
        %1099 = vrot.lane.b32.xlu0 %v618, 112
        %v1100 = vpop.permute.xlu0 %1099
        %1101 = vrot.lane.b32.xlu0 %v618, 80
        %v1102 = vpop.permute.xlu0 %1101
        %v1104 = vsel %vm623, %v1100, 0
        %v1107 = vsel %vm623, %v1102, 0
        %1109 = vmatprep.subr.bf16.mxu0 0
        %1110 = vmatpush1.bf16.xpose.msra.mxu0 %v1107
        %1111 = vmatprep.subr.bf16.mxu0 0
        %1112 = vmatpush1.bf16.xpose.msra.mxu0 0
        %1113 = vmatprep.subr.bf16.mxu0 0
        %1114 = vmatpush1.bf16.xpose.msra.mxu0 0
        %1115 = vmatprep.subr.bf16.mxu0 0
        %1116 = vmatpush1.bf16.xpose.msra.mxu0 0
        %1117 = vmatprep.subr.bf16.mxu0 0
        %1118 = vmatpush1.bf16.xpose.msra.mxu0 0
        %1119 = vmatprep.subr.bf16.mxu0 0
        %1120 = vmatpush1.bf16.xpose.msra.mxu0 0
        %1121 = vmatprep.subr.bf16.mxu0 0
        %1122 = vmatpush1.bf16.xpose.msra.mxu0 0
        %1123 = vmatprep.subr.bf16.mxu0 0
        %1124 = vmatpush1.bf16.xpose.msra.mxu0 0
        %1125 = vmatprep.subr.bf16.mxu0 0
        %1126 = vmatpush1.bf16.xpose.msra.mxu0 0
        %1127 = vmatprep.subr.bf16.mxu0 0
        %1128 = vmatpush1.bf16.xpose.msra.mxu0 0
        %1129 = vmatprep.subr.bf16.mxu0 0
        %1130 = vmatpush1.bf16.xpose.msra.mxu0 0
        %1131 = vmatprep.subr.bf16.mxu0 0
        %1132 = vmatpush1.bf16.xpose.msra.mxu0 0
        %1133 = vmatprep.subr.bf16.mxu0 0
        %1134 = vmatpush1.bf16.xpose.msra.mxu0 0
        %1135 = vmatprep.subr.bf16.mxu0 0
        %1136 = vmatpush1.bf16.xpose.msra.mxu0 0
        %1137 = vmatprep.subr.bf16.mxu0 0
        %1138 = vmatpush1.bf16.xpose.msra.mxu0 0
        %1139 = vmatprep.subr.bf16.mxu0 0
        %1140 = vmatpush1.bf16.xpose.msra.mxu0 0
        %1141 = vmatprep.mubr.bf16.mxu0 0
        %1142 = vmatmul.mubr.bf16.gmra.mrb[0].mxu0 %v1104
        %v1143 = vpop.f32.mrb[0].mxu0
        %v1144 = vadd.f32 %v1092, %v1143
        %v1145 = vpop.f32.mrb[0].mxu0
        %v1146 = vpop.f32.mrb[0].mxu0
        %v1147 = vpop.f32.mrb[0].mxu0
        %1148 = vdwg.mxu0
        %v1149 = vsel %vm725, -1e+09, %v1144
        %v1150 = vsel %vm623, %v1149, -inf
        %1151 = vmax.xlane.f32.xlu0 %v1150
        %v1152 = vpop.xlane.xlu0 %1151
        %v1153 = vsub.f32 %v1149, %v1152
        %v1154 = vmul.f32 %v1153, 1.442695
        %v1155 = vpow.pop %v1154
        %v1156 = vsel %vm623, %v1155, 0.0
        %1157 = vadd.xlane.f32.xlu0 %v1156
        %v1158 = vpop.xlane.xlu0 %1157
        %v1159 = vrcp.pop %v1158
        %v1160 = vmul.f32 %v1155, %v1159
        %v1161 = vpack.c.bf16 %v1160, %v1160
        %1162 = vrot.lane.b32.xlu0 %v618, 48
        %v1163 = vpop.permute.xlu0 %1162
        %v1165 = vsel %vm623, %v1161, 0
        %v1168 = vsel %vm744, %v1163, 0
        %1170 = vmatprep.subr.bf16.mxu0 0
        %1171 = vmatpush1.bf16.msra.mxu0 %v1168
        %1172 = vmatprep.subr.bf16.mxu0 0
        %1173 = vmatpush1.bf16.msra.mxu0 0
        %1174 = vmatprep.subr.bf16.mxu0 0
        %1175 = vmatpush1.bf16.msra.mxu0 0
        %1176 = vmatprep.subr.bf16.mxu0 0
        %1177 = vmatpush1.bf16.msra.mxu0 0
        %1178 = vmatprep.subr.bf16.mxu0 0
        %1179 = vmatpush1.bf16.msra.mxu0 0
        %1180 = vmatprep.subr.bf16.mxu0 0
        %1181 = vmatpush1.bf16.msra.mxu0 0
        %1182 = vmatprep.subr.bf16.mxu0 0
        %1183 = vmatpush1.bf16.msra.mxu0 0
        %1184 = vmatprep.subr.bf16.mxu0 0
        %1185 = vmatpush1.bf16.msra.mxu0 0
        %1186 = vmatprep.subr.bf16.mxu0 0
        %1187 = vmatpush1.bf16.msra.mxu0 0
        %1188 = vmatprep.subr.bf16.mxu0 0
        %1189 = vmatpush1.bf16.msra.mxu0 0
        %1190 = vmatprep.subr.bf16.mxu0 0
        %1191 = vmatpush1.bf16.msra.mxu0 0
        %1192 = vmatprep.subr.bf16.mxu0 0
        %1193 = vmatpush1.bf16.msra.mxu0 0
        %1194 = vmatprep.subr.bf16.mxu0 0
        %1195 = vmatpush1.bf16.msra.mxu0 0
        %1196 = vmatprep.subr.bf16.mxu0 0
        %1197 = vmatpush1.bf16.msra.mxu0 0
        %1198 = vmatprep.subr.bf16.mxu0 0
        %1199 = vmatpush1.bf16.msra.mxu0 0
        %1200 = vmatprep.subr.bf16.mxu0 0
        %1201 = vmatpush1.bf16.msra.mxu0 0
        %1202 = vmatprep.mubr.bf16.mxu0 0
        %1203 = vmatmul.mubr.bf16.gmra.mrb[0].mxu0 %v1165
        %v1204 = vpop.f32.mrb[0].mxu0
        %v1205 = vadd.f32 0.0, %v1204
        %v1206 = vpop.f32.mrb[0].mxu0
        %v1207 = vpop.f32.mrb[0].mxu0
        %v1208 = vpop.f32.mrb[0].mxu0
        %1209 = vdwg.mxu0
        %v1210 = vpack.c.bf16 %v1205, %v1205
        %v1211 = vld [vmem:[#allocation10 + $0x8] sm:$0xf]
        %v1213 = vsel %vm623, %v1210, 0
        %v1216 = vsel %vm744, %v1211, 0
        %1218 = vmatprep.subr.bf16.mxu0 0
        %1219 = vmatpush1.bf16.msra.mxu0 %v1216
        %1220 = vmatprep.subr.bf16.mxu0 0
        %1221 = vmatpush1.bf16.msra.mxu0 0
        %1222 = vmatprep.subr.bf16.mxu0 0
        %1223 = vmatpush1.bf16.msra.mxu0 0
        %1224 = vmatprep.subr.bf16.mxu0 0
        %1225 = vmatpush1.bf16.msra.mxu0 0
        %1226 = vmatprep.subr.bf16.mxu0 0
        %1227 = vmatpush1.bf16.msra.mxu0 0
        %1228 = vmatprep.subr.bf16.mxu0 0
        %1229 = vmatpush1.bf16.msra.mxu0 0
        %1230 = vmatprep.subr.bf16.mxu0 0
        %1231 = vmatpush1.bf16.msra.mxu0 0
        %1232 = vmatprep.subr.bf16.mxu0 0
        %1233 = vmatpush1.bf16.msra.mxu0 0
        %1234 = vmatprep.subr.bf16.mxu0 0
        %1235 = vmatpush1.bf16.msra.mxu0 0
        %1236 = vmatprep.subr.bf16.mxu0 0
        %1237 = vmatpush1.bf16.msra.mxu0 0
        %1238 = vmatprep.subr.bf16.mxu0 0
        %1239 = vmatpush1.bf16.msra.mxu0 0
        %1240 = vmatprep.subr.bf16.mxu0 0
        %1241 = vmatpush1.bf16.msra.mxu0 0
        %1242 = vmatprep.subr.bf16.mxu0 0
        %1243 = vmatpush1.bf16.msra.mxu0 0
        %1244 = vmatprep.subr.bf16.mxu0 0
        %1245 = vmatpush1.bf16.msra.mxu0 0
        %1246 = vmatprep.subr.bf16.mxu0 0
        %1247 = vmatpush1.bf16.msra.mxu0 0
        %1248 = vmatprep.subr.bf16.mxu0 0
        %1249 = vmatpush1.bf16.msra.mxu0 0
        %1250 = vmatprep.mubr.bf16.mxu0 0
        %1251 = vmatmul.mubr.bf16.gmra.mrb[0].mxu0 %v1213
        %v1252 = vpop.f32.mrb[0].mxu0
        %v1253 = vadd.f32 0.0, %v1252
        %v1254 = vpop.f32.mrb[0].mxu0
        %v1255 = vpop.f32.mrb[0].mxu0
        %v1256 = vpop.f32.mrb[0].mxu0
        %1257 = vdwg.mxu0
        %v1258 = vadd.f32 %v1042, %v1253
        %1259 = vrot.lane.b32.xlu0 %v619, 104
        %v1260 = vpop.permute.xlu0 %1259
        %1261 = vrot.lane.b32.xlu0 %v619, 72
        %v1262 = vpop.permute.xlu0 %1261
        %v1264 = vsel %vm623, %v1260, 0
        %v1267 = vsel %vm623, %v1262, 0
        %1269 = vmatprep.subr.bf16.mxu0 0
        %1270 = vmatpush1.bf16.xpose.msra.mxu0 %v1267
        %1271 = vmatprep.subr.bf16.mxu0 0
        %1272 = vmatpush1.bf16.xpose.msra.mxu0 0
        %1273 = vmatprep.subr.bf16.mxu0 0
        %1274 = vmatpush1.bf16.xpose.msra.mxu0 0
        %1275 = vmatprep.subr.bf16.mxu0 0
        %1276 = vmatpush1.bf16.xpose.msra.mxu0 0
        %1277 = vmatprep.subr.bf16.mxu0 0
        %1278 = vmatpush1.bf16.xpose.msra.mxu0 0
        %1279 = vmatprep.subr.bf16.mxu0 0
        %1280 = vmatpush1.bf16.xpose.msra.mxu0 0
        %1281 = vmatprep.subr.bf16.mxu0 0
        %1282 = vmatpush1.bf16.xpose.msra.mxu0 0
        %1283 = vmatprep.subr.bf16.mxu0 0
        %1284 = vmatpush1.bf16.xpose.msra.mxu0 0
        %1285 = vmatprep.subr.bf16.mxu0 0
        %1286 = vmatpush1.bf16.xpose.msra.mxu0 0
        %1287 = vmatprep.subr.bf16.mxu0 0
        %1288 = vmatpush1.bf16.xpose.msra.mxu0 0
        %1289 = vmatprep.subr.bf16.mxu0 0
        %1290 = vmatpush1.bf16.xpose.msra.mxu0 0
        %1291 = vmatprep.subr.bf16.mxu0 0
        %1292 = vmatpush1.bf16.xpose.msra.mxu0 0
        %1293 = vmatprep.subr.bf16.mxu0 0
        %1294 = vmatpush1.bf16.xpose.msra.mxu0 0
        %1295 = vmatprep.subr.bf16.mxu0 0
        %1296 = vmatpush1.bf16.xpose.msra.mxu0 0
        %1297 = vmatprep.subr.bf16.mxu0 0
        %1298 = vmatpush1.bf16.xpose.msra.mxu0 0
        %1299 = vmatprep.subr.bf16.mxu0 0
        %1300 = vmatpush1.bf16.xpose.msra.mxu0 0
        %1301 = vmatprep.mubr.bf16.mxu0 0
        %1302 = vmatmul.mubr.bf16.gmra.mrb[0].mxu0 %v1264
        %v1303 = vpop.f32.mrb[0].mxu0
        %v1304 = vadd.f32 0.0, %v1303
        %v1305 = vpop.f32.mrb[0].mxu0
        %v1306 = vpop.f32.mrb[0].mxu0
        %v1307 = vpop.f32.mrb[0].mxu0
        %1308 = vdwg.mxu0
        %s1309 = scalar_lea.vmem %s474, 24 [#allocation12]
        %1310 = vst.msk [vmem:[%s1309] sm:$0xff] %vm623, %v1304
        %1311 = vrot.lane.b32.xlu0 %v618, 104
        %v1312 = vpop.permute.xlu0 %1311
        %1313 = vrot.lane.b32.xlu0 %v618, 72
        %v1314 = vpop.permute.xlu0 %1313
        %v1316 = vsel %vm623, %v1312, 0
        %v1319 = vsel %vm623, %v1314, 0
        %1321 = vmatprep.subr.bf16.mxu0 0
        %1322 = vmatpush1.bf16.xpose.msra.mxu0 %v1319
        %1323 = vmatprep.subr.bf16.mxu0 0
        %1324 = vmatpush1.bf16.xpose.msra.mxu0 0
        %1325 = vmatprep.subr.bf16.mxu0 0
        %1326 = vmatpush1.bf16.xpose.msra.mxu0 0
        %1327 = vmatprep.subr.bf16.mxu0 0
        %1328 = vmatpush1.bf16.xpose.msra.mxu0 0
        %1329 = vmatprep.subr.bf16.mxu0 0
        %1330 = vmatpush1.bf16.xpose.msra.mxu0 0
        %1331 = vmatprep.subr.bf16.mxu0 0
        %1332 = vmatpush1.bf16.xpose.msra.mxu0 0
        %1333 = vmatprep.subr.bf16.mxu0 0
        %1334 = vmatpush1.bf16.xpose.msra.mxu0 0
        %1335 = vmatprep.subr.bf16.mxu0 0
        %1336 = vmatpush1.bf16.xpose.msra.mxu0 0
        %1337 = vmatprep.subr.bf16.mxu0 0
        %1338 = vmatpush1.bf16.xpose.msra.mxu0 0
        %1339 = vmatprep.subr.bf16.mxu0 0
        %1340 = vmatpush1.bf16.xpose.msra.mxu0 0
        %1341 = vmatprep.subr.bf16.mxu0 0
        %1342 = vmatpush1.bf16.xpose.msra.mxu0 0
        %1343 = vmatprep.subr.bf16.mxu0 0
        %1344 = vmatpush1.bf16.xpose.msra.mxu0 0
        %1345 = vmatprep.subr.bf16.mxu0 0
        %1346 = vmatpush1.bf16.xpose.msra.mxu0 0
        %1347 = vmatprep.subr.bf16.mxu0 0
        %1348 = vmatpush1.bf16.xpose.msra.mxu0 0
        %1349 = vmatprep.subr.bf16.mxu0 0
        %1350 = vmatpush1.bf16.xpose.msra.mxu0 0
        %1351 = vmatprep.subr.bf16.mxu0 0
        %1352 = vmatpush1.bf16.xpose.msra.mxu0 0
        %1353 = vmatprep.mubr.bf16.mxu0 0
        %1354 = vmatmul.mubr.bf16.gmra.mrb[0].mxu0 %v1316
        %v1355 = vpop.f32.mrb[0].mxu0
        %v1356 = vadd.f32 %v1304, %v1355
        %v1357 = vpop.f32.mrb[0].mxu0
        %v1358 = vpop.f32.mrb[0].mxu0
        %v1359 = vpop.f32.mrb[0].mxu0
        %1360 = vdwg.mxu0
        %v1361 = vsel %vm725, -1e+09, %v1356
        %v1362 = vsel %vm623, %v1361, -inf
        %1363 = vmax.xlane.f32.xlu0 %v1362
        %v1364 = vpop.xlane.xlu0 %1363
        %v1365 = vsub.f32 %v1361, %v1364
        %v1366 = vmul.f32 %v1365, 1.442695
        %v1367 = vpow.pop %v1366
        %v1368 = vsel %vm623, %v1367, 0.0
        %1369 = vadd.xlane.f32.xlu0 %v1368
        %v1370 = vpop.xlane.xlu0 %1369
        %v1371 = vrcp.pop %v1370
        %v1372 = vmul.f32 %v1367, %v1371
        %v1373 = vpack.c.bf16 %v1372, %v1372
        %1374 = vrot.lane.b32.xlu0 %v618, 40
        %v1375 = vpop.permute.xlu0 %1374
        %v1377 = vsel %vm623, %v1373, 0
        %v1380 = vsel %vm744, %v1375, 0
        %1382 = vmatprep.subr.bf16.mxu0 0
        %1383 = vmatpush1.bf16.msra.mxu0 %v1380
        %1384 = vmatprep.subr.bf16.mxu0 0
        %1385 = vmatpush1.bf16.msra.mxu0 0
        %1386 = vmatprep.subr.bf16.mxu0 0
        %1387 = vmatpush1.bf16.msra.mxu0 0
        %1388 = vmatprep.subr.bf16.mxu0 0
        %1389 = vmatpush1.bf16.msra.mxu0 0
        %1390 = vmatprep.subr.bf16.mxu0 0
        %1391 = vmatpush1.bf16.msra.mxu0 0
        %1392 = vmatprep.subr.bf16.mxu0 0
        %1393 = vmatpush1.bf16.msra.mxu0 0
        %1394 = vmatprep.subr.bf16.mxu0 0
        %1395 = vmatpush1.bf16.msra.mxu0 0
        %1396 = vmatprep.subr.bf16.mxu0 0
        %1397 = vmatpush1.bf16.msra.mxu0 0
        %1398 = vmatprep.subr.bf16.mxu0 0
        %1399 = vmatpush1.bf16.msra.mxu0 0
        %1400 = vmatprep.subr.bf16.mxu0 0
        %1401 = vmatpush1.bf16.msra.mxu0 0
        %1402 = vmatprep.subr.bf16.mxu0 0
        %1403 = vmatpush1.bf16.msra.mxu0 0
        %1404 = vmatprep.subr.bf16.mxu0 0
        %1405 = vmatpush1.bf16.msra.mxu0 0
        %1406 = vmatprep.subr.bf16.mxu0 0
        %1407 = vmatpush1.bf16.msra.mxu0 0
        %1408 = vmatprep.subr.bf16.mxu0 0
        %1409 = vmatpush1.bf16.msra.mxu0 0
        %1410 = vmatprep.subr.bf16.mxu0 0
        %1411 = vmatpush1.bf16.msra.mxu0 0
        %1412 = vmatprep.subr.bf16.mxu0 0
        %1413 = vmatpush1.bf16.msra.mxu0 0
        %1414 = vmatprep.mubr.bf16.mxu0 0
        %1415 = vmatmul.mubr.bf16.gmra.mrb[0].mxu0 %v1377
        %v1416 = vpop.f32.mrb[0].mxu0
        %v1417 = vadd.f32 0.0, %v1416
        %v1418 = vpop.f32.mrb[0].mxu0
        %v1419 = vpop.f32.mrb[0].mxu0
        %v1420 = vpop.f32.mrb[0].mxu0
        %1421 = vdwg.mxu0
        %v1422 = vpack.c.bf16 %v1417, %v1417
        %v1423 = vld [vmem:[#allocation10 + $0xc] sm:$0xf]
        %v1425 = vsel %vm623, %v1422, 0
        %v1428 = vsel %vm744, %v1423, 0
        %1430 = vmatprep.subr.bf16.mxu0 0
        %1431 = vmatpush1.bf16.msra.mxu0 %v1428
        %1432 = vmatprep.subr.bf16.mxu0 0
        %1433 = vmatpush1.bf16.msra.mxu0 0
        %1434 = vmatprep.subr.bf16.mxu0 0
        %1435 = vmatpush1.bf16.msra.mxu0 0
        %1436 = vmatprep.subr.bf16.mxu0 0
        %1437 = vmatpush1.bf16.msra.mxu0 0
        %1438 = vmatprep.subr.bf16.mxu0 0
        %1439 = vmatpush1.bf16.msra.mxu0 0
        %1440 = vmatprep.subr.bf16.mxu0 0
        %1441 = vmatpush1.bf16.msra.mxu0 0
        %1442 = vmatprep.subr.bf16.mxu0 0
        %1443 = vmatpush1.bf16.msra.mxu0 0
        %1444 = vmatprep.subr.bf16.mxu0 0
        %1445 = vmatpush1.bf16.msra.mxu0 0
        %1446 = vmatprep.subr.bf16.mxu0 0
        %1447 = vmatpush1.bf16.msra.mxu0 0
        %1448 = vmatprep.subr.bf16.mxu0 0
        %1449 = vmatpush1.bf16.msra.mxu0 0
        %1450 = vmatprep.subr.bf16.mxu0 0
        %1451 = vmatpush1.bf16.msra.mxu0 0
        %1452 = vmatprep.subr.bf16.mxu0 0
        %1453 = vmatpush1.bf16.msra.mxu0 0
        %1454 = vmatprep.subr.bf16.mxu0 0
        %1455 = vmatpush1.bf16.msra.mxu0 0
        %1456 = vmatprep.subr.bf16.mxu0 0
        %1457 = vmatpush1.bf16.msra.mxu0 0
        %1458 = vmatprep.subr.bf16.mxu0 0
        %1459 = vmatpush1.bf16.msra.mxu0 0
        %1460 = vmatprep.subr.bf16.mxu0 0
        %1461 = vmatpush1.bf16.msra.mxu0 0
        %1462 = vmatprep.mubr.bf16.mxu0 0
        %1463 = vmatmul.mubr.bf16.gmra.mrb[0].mxu0 %v1425
        %v1464 = vpop.f32.mrb[0].mxu0
        %v1465 = vadd.f32 0.0, %v1464
        %v1466 = vpop.f32.mrb[0].mxu0
        %v1467 = vpop.f32.mrb[0].mxu0
        %v1468 = vpop.f32.mrb[0].mxu0
        %1469 = vdwg.mxu0
        %v1470 = vadd.f32 %v1258, %v1465
        %v1471 = vld [vmem:[%s8] sm:$0x1]
        %v1473 = vlaneseq
        %v1474 = vshrl.u32 %v1473, 7
        %v1475 = vsub.s32 0, %v1474
        %v1476 = vrot.slane %v1471, %v1475
        %v1478 = vadd.f32 %v1470, %v1476
        %1479 = vst.msk [vmem:[%s467] sm:$0xff] %vm506, %v1478
        %s1480 = sand.u32 %s247, 1
        %s1481 = scalar_lea.sflag [#allocation4], %s1480
        %s1482 = sand.u32 %s247, 1
        %s1483 = smul.addr %s1482, 8
        %s1484 = scalar_lea.vmem [#allocation11], %s1483
        %s1485 = sand.u32 %s273, 1
        %s1486 = scalar_lea.sflag [#allocation13], %s1485
        %s1487 = sand.u32 %s273, 1
        %s1488 = smul.addr %s1487, 32
        %s1489 = scalar_lea.vmem [#allocation12], %s1488
        // Predicated region
        $region77: #{tpu_custom_call.1} parent=55 // pred_check
          %p1490 = pneg %p257
        $region78: #{tpu_custom_call.1} parent=55 // pred_check_branch
          %1492 = sbr.rel (%p1490) target = $region80
        $region79: #{tpu_custom_call.1} parent=55 // pred_region
          %s1494 = ssub.s32 128, 128
          %1495 = vsyncadd %s1481, %s1494
          %s1496 = smul.addr %s35, 128
          %s1497 = scalar_lea.hbm %s9, %s1496
          %s1499 = sshll.u32 %s1484, 4
          %s1500 = int_to_ptr.vmem [resolvable:$true] %s1499
          %1502 = dma.vmem_to_hbm [thread:$0]  %s1500, 128, %s1497, %s1481
        $region80: #{tpu_custom_call.1} parent=55 // pred_fallthru
          _
        // Predicated region
        $region81: #{tpu_custom_call.1} parent=55 // pred_check
          %p1503 = pneg %p283
        $region82: #{tpu_custom_call.1} parent=55 // pred_check_branch
          %1505 = sbr.rel (%p1503) target = $region84
        $region83: #{tpu_custom_call.1} parent=55 // pred_region
          %s1507 = ssub.s32 512, 512
          %1508 = vsyncadd %s1486, %s1507
          %s1509 = smul.addr %s35, 128
          %s1510 = scalar_lea.hbm %s10, %s1509
          %s1511 = sshll.u32 %s1489, 4
          %s1512 = int_to_ptr.vmem [resolvable:$true] %s1511
          %1517 = dma.vmem_to_hbm [thread:$0]  %s1512, 512, %s1510, %s1486, 128, 256, 8
        $region84: #{tpu_custom_call.1} parent=55 // pred_fallthru
          _
      $region56: #{tpu_custom_call.1} parent=5 // pred_fallthru
        _
      %p1518 = scmp.le.s32.totalorder 2, %s30
      // Predicated region
      $region85: #{tpu_custom_call.1} parent=5 // pred_check
        %p1519 = pneg %p1518
      $region86: #{tpu_custom_call.1} parent=5 // pred_check_branch
        %1521 = sbr.rel (%p1519) target = $region88
      $region87: #{tpu_custom_call.1} parent=5 // pred_region
        %s1522 = ssub.s32 %s30, 2
        // Predicated region
        $region89: #{tpu_custom_call.1} parent=87 // pred_check
          %p1523 = pneg %p263
        $region90: #{tpu_custom_call.1} parent=87 // pred_check_branch
          %1525 = sbr.rel (%p1523) target = $region92
        $region91: #{tpu_custom_call.1} parent=87 // pred_region
          %s1526 = sand.u32 %s248, 1
          %s1527 = scalar_lea.sflag [#allocation4], %s1526
          %s1528 = sand.u32 %s248, 1
          %s1529 = smul.addr %s1528, 8
          %s1530 = scalar_lea.vmem [#allocation11], %s1529
          %1531 = dma.done %s1527, 128
        $region92: #{tpu_custom_call.1} parent=87 // pred_fallthru
          _
        // Predicated region
        $region93: #{tpu_custom_call.1} parent=87 // pred_check
          %p1532 = pneg %p289
        $region94: #{tpu_custom_call.1} parent=87 // pred_check_branch
          %1534 = sbr.rel (%p1532) target = $region96
        $region95: #{tpu_custom_call.1} parent=87 // pred_region
          %s1535 = sand.u32 %s274, 1
          %s1536 = scalar_lea.sflag [#allocation13], %s1535
          %s1537 = sand.u32 %s274, 1
          %s1538 = smul.addr %s1537, 32
          %s1539 = scalar_lea.vmem [#allocation12], %s1538
          %1540 = dma.done %s1536, 512
        $region96: #{tpu_custom_call.1} parent=87 // pred_fallthru
          _
      $region88: #{tpu_custom_call.1} parent=5 // pred_fallthru
        _
    $region6: #{tpu_custom_call.1} parent=1 // loop_footer
      %s34 = sadd.s32 1, %s30
    $region7: #{tpu_custom_call.1} parent=1 // loop_footer_branch
      %29 = sbr.rel target = $region3
    $region8: #{tpu_custom_call.1} parent=1 // loop_exit
      _
    %1541 = vsyncpa [#allocation3], 1
    %s1542 = scalar_lea.sflag [#allocation3], 1
    %1543 = vsyncpa %s1542, 1
    %1544 = vsyncpa [#allocation6], 1
    %s1545 = scalar_lea.sflag [#allocation6], 1
    %1546 = vsyncpa %s1545, 1
    %1547 = vsyncpa [#allocation9], 1
    %1548 = vsyncpa [#allocation4], 1
    %s1549 = scalar_lea.sflag [#allocation4], 1
    %1550 = vsyncpa %s1549, 1
    %1551 = vsyncpa [#allocation13], 1
    %s1552 = scalar_lea.sflag [#allocation13], 1
    %1553 = vsyncpa %s1552, 1

</llo_original>
